<compile_context>
chip_gen: v6e
topology: v6e:2x2x1
jax: 0.10.0
libtpu: 0.0.40
codegen_flags: <defaults>
</compile_context>

<pallas_src>
import jax
import jax.numpy as jnp
from jax.experimental import pallas as pl
from jax.experimental.pallas import tpu as pltpu

EPS = 1e-5


def make_basic_block_kernel(N, C, H, W):
    HW = H * W
    inv_m = 1.0 / (N * HW)

    def kernel(x_ref, w1_ref, g1_ref, b1_ref, w2_ref, g2_ref, b2_ref,
               o_ref, pat_ref):
        # x_ref  : (N, C, HW)   f32   flattened NCHW input
        # w*_ref : (C, 9*C)     bf16  (Cout, tap-major 9*Cin) conv weights
        # g*/b*  : (C, 1)       f32   BN gamma / beta
        # o_ref  : (N, C, HW)   f32   output (pure reshape of NCHW)
        # pat_ref: (9*C, HW)    bf16  im2col patch scratch (reused 2*N times)

        # Edge masks along the flattened spatial (lane) axis, built once and
        # reused by both convs and every image.  Only dw = +-1 taps need one.
        w_idx = jax.lax.broadcasted_iota(jnp.int32, (1, HW), 1) % W
        mask_l = (w_idx != 0).astype(jnp.float32)        # kills wrap at w == 0
        mask_r = (w_idx != W - 1).astype(jnp.float32)    # kills wrap at w == W-1
        zpad = jnp.zeros((C, W + 1), jnp.float32)
        ones_col = jnp.ones((HW, 1), jnp.float32)

        def conv3x3(acts, w_ref):
            """acts: list of N (C, HW) f32 slabs -> list of N (Cout, HW) f32."""
            wmat = w_ref[...]                             # (Cout, 9C) bf16
            outs = []
            for a in acts:
                # W+1 zeros on each end handle the h = -1 / H halo rows; the
                # lane masks handle the w = -1 / W columns.  Every tap is then
                # a contiguous lane-axis slice: no strided slices, no retiling
                # copies, no halo stores.
                apad = jnp.concatenate([zpad, a, zpad], axis=1)  # (C, HW+2W+2)
                for k in range(9):
                    dh, dw = k // 3, k % 3
                    off = (W + 1) + (dh - 1) * W + (dw - 1)
                    t = apad[:, off:off + HW]
                    if dw == 0:
                        t = t * mask_l
                    elif dw == 2:
                        t = t * mask_r
                    # Full-width, lane-dense row-slab write; rows k*C:(k+1)*C
                    # hold tap k (channel-minor), matching the weight layout.
                    pat_ref[k * C:(k + 1) * C, :] = t.astype(pat_ref.dtype)
                # Single long-K MXU matmul with M on the output lane axis.
                outs.append(jnp.dot(wmat, pat_ref[...],
                                    preferred_element_type=jnp.float32))
            return outs

        def batchnorm(ys, g_ref, b_ref):
            """Training-mode BN over (N, HW) per channel, one-pass stats on MXU."""
            s = jnp.zeros((C, 1), jnp.float32)
            s2 = jnp.zeros((C, 1), jnp.float32)
            for y in ys:
                s = s + jnp.dot(y, ones_col, preferred_element_type=jnp.float32)
                s2 = s2 + jnp.dot(y * y, ones_col,
                                  preferred_element_type=jnp.float32)
            mean = s * inv_m
            var = s2 * inv_m - mean * mean               # biased variance
            scale = g_ref[...] * jax.lax.rsqrt(var + EPS)   # (C, 1)
            shift = b_ref[...] - mean * scale               # (C, 1)
            return [y * scale + shift for y in ys]

        xs = [x_ref[n] for n in range(N)]    # f32 residual inputs, loaded once

        # conv1 -> bn1 -> relu
        h1 = [jnp.maximum(y, 0.0)
              for y in batchnorm(conv3x3(xs, w1_ref), g1_ref, b1_ref)]
        # conv2 -> bn2
        h2 = batchnorm(conv3x3(h1, w2_ref), g2_ref, b2_ref)
        # residual add (pre-bf16 f32 identity) -> relu -> lane-dense store
        for n in range(N):
            o_ref[n] = jnp.maximum(h2[n] + xs[n], 0.0)

    return kernel


@jax.jit
def basic_block_pallas(x_nchw, w1, g1, b1, w2, g2, b2):
    """x_nchw: (N, C, H, W) f32.  w*: (Cout, Cin, 3, 3) torch-style OIHW."""
    N, C, H, W = x_nchw.shape
    HW = H * W

    # Pure reshape (no transpose, no extra HBM pass): NCHW -> (N, C, HW).
    x_flat = x_nchw.reshape(N, C, HW)

    # OIHW -> (Cout, kh, kw, Cin) -> (Cout, 9*Cin); bf16 for the MXU.
    # Column order (kh*3 + kw)*Cin + cin matches the kernel's patch rows.
    w1r = jnp.transpose(w1, (0, 2, 3, 1)).reshape(C, 9 * C).astype(jnp.bfloat16)
    w2r = jnp.transpose(w2, (0, 2, 3, 1)).reshape(C, 9 * C).astype(jnp.bfloat16)
    g1r, b1r = g1.reshape(C, 1), b1.reshape(C, 1)
    g2r, b2r = g2.reshape(C, 1), b2.reshape(C, 1)

    vmem = pl.BlockSpec(memory_space=pltpu.MemorySpace.VMEM)
    out_flat = pl.pallas_call(
        make_basic_block_kernel(N, C, H, W),
        out_shape=jax.ShapeDtypeStruct((N, C, HW), jnp.float32),
        in_specs=[vmem] * 7,
        out_specs=vmem,
        scratch_shapes=[pltpu.VMEM((9 * C, HW), jnp.bfloat16)],  # im2col patches
        compiler_params=pltpu.CompilerParams(
            vmem_limit_bytes=32 * 1024 * 1024),
    )(x_flat, w1r, g1r, b1r, w2r, g2r, b2r)

    # Pure reshape back to NCHW.
    return out_flat.reshape(N, C, H, W)


# ---------------- pure-JAX f32 reference (mirrors the torch forward) --------
def _ref_conv(x, w):
    return jax.lax.conv_general_dilated(
        x, w, window_strides=(1, 1), padding=((1, 1), (1, 1)),
        dimension_numbers=("NCHW", "OIHW", "NCHW"))


def _ref_bn(x, g, b):
    mean = jnp.mean(x, axis=(0, 2, 3), keepdims=True)
    var = jnp.mean((x - mean) ** 2, axis=(0, 2, 3), keepdims=True)
    return (x - mean) * jax.lax.rsqrt(var + EPS) * g.reshape(1, -1, 1, 1) \
        + b.reshape(1, -1, 1, 1)


def basic_block_ref(x, w1, g1, b1, w2, g2, b2):
    out = jax.nn.relu(_ref_bn(_ref_conv(x, w1), g1, b1))
    out = _ref_bn(_ref_conv(out, w2), g2, b2) + x
    return jax.nn.relu(out)


if __name__ == "__main__":
    N, C, H, W = 2, 4, 16, 16   # inplanes == planes == 4, stride=1, no downsample
    key = jax.random.PRNGKey(0)
    kx, kw1, kw2, kg1, kb1, kg2, kb2 = jax.random.split(key, 7)

    x = jax.random.normal(kx, (N, C, H, W), jnp.float32)
    w1 = jax.random.normal(kw1, (C, C, 3, 3), jnp.float32) * 0.1
    w2 = jax.random.normal(kw2, (C, C, 3, 3), jnp.float32) * 0.1
    g1 = 1.0 + 0.1 * jax.random.normal(kg1, (C,), jnp.float32)
    b1 = 0.1 * jax.random.normal(kb1, (C,), jnp.float32)
    g2 = 1.0 + 0.1 * jax.random.normal(kg2, (C,), jnp.float32)
    b2 = 0.1 * jax.random.normal(kb2, (C,), jnp.float32)

    out = jax.block_until_ready(basic_block_pallas(x, w1, g1, b1, w2, g2, b2))
    ref = jax.block_until_ready(basic_block_ref(x, w1, g1, b1, w2, g2, b2))

    assert out.shape == (N, C, H, W)
    max_err = float(jnp.max(jnp.abs(out - ref)))
    # Kernel uses bf16 MXU operands with f32 accumulation; the reference is
    # pure f32, so tolerance covers bf16 operand rounding amplified through
    # two convs + batch-norms.  Structural bugs (tap order/offsets, edge
    # masks, BN, residual) would give O(1) errors and still fail this check.
    assert jnp.allclose(out, ref, atol=5e-2, rtol=5e-2), max_err
    print("KERNEL_OK")
</pallas_src>

<mosaic_0001>
module attributes {stable_mosaic.version = 11 : i64} {
  func.func @kernel(%arg0: memref<2x4x256xf32, #tpu.memory_space<vmem>>, %arg1: memref<4x36xbf16, #tpu.memory_space<vmem>>, %arg2: memref<4x1xf32, #tpu.memory_space<vmem>>, %arg3: memref<4x1xf32, #tpu.memory_space<vmem>>, %arg4: memref<4x36xbf16, #tpu.memory_space<vmem>>, %arg5: memref<4x1xf32, #tpu.memory_space<vmem>>, %arg6: memref<4x1xf32, #tpu.memory_space<vmem>>, %arg7: memref<2x4x256xf32, #tpu.memory_space<vmem>>, %arg8: memref<36x256xbf16, #tpu.memory_space<vmem>>) attributes {dimension_semantics = [], scalar_prefetch = 0 : i64, scratch_operands = 1 : i64, tpu.core_type = #tpu.core_type<tc>} {
    %0 = tpu.iota {dimensions = array<i32: 1>} : vector<1x256xi32>
    %c16_i32 = arith.constant 16 : i32
    %c0_i32 = arith.constant 0 : i32
    %1 = arith.cmpi eq, %c16_i32, %c0_i32 : i32
    %c1_i32 = arith.constant 1 : i32
    %2 = arith.select %1, %c1_i32, %c16_i32 : i32
    %3 = vector.broadcast %2 : i32 to vector<1x256xi32>
    %4 = arith.remsi %0, %3 : vector<1x256xi32>
    %c0_i32_0 = arith.constant 0 : i32
    %5 = vector.broadcast %c0_i32_0 : i32 to vector<1x256xi32>
    %6 = arith.cmpi ne, %4, %5 : vector<1x256xi32>
    %c0_i32_1 = arith.constant 0 : i32
    %7 = vector.broadcast %c0_i32_1 : i32 to vector<1x256xi32>
    %8 = arith.cmpi slt, %4, %7 : vector<1x256xi32>
    %c0_i32_2 = arith.constant 0 : i32
    %9 = arith.cmpi slt, %2, %c0_i32_2 : i32
    %10 = vector.broadcast %9 : i1 to vector<1x256xi1>
    %11 = vector.broadcast %10 : vector<1x256xi1> to vector<1x256xi1>
    %12 = arith.xori %8, %11 : vector<1x256xi1>
    %13 = arith.andi %12, %6 : vector<1x256xi1>
    %14 = vector.broadcast %2 : i32 to vector<1x256xi32>
    %15 = arith.addi %4, %14 : vector<1x256xi32>
    %16 = arith.select %13, %15, %4 : vector<1x256xi1>, vector<1x256xi32>
    %c0_i32_3 = arith.constant 0 : i32
    %17 = vector.broadcast %c0_i32_3 : i32 to vector<1x256xi32>
    %18 = arith.cmpi ne, %16, %17 : vector<1x256xi32>
    %19 = arith.extui %18 : vector<1x256xi1> to vector<1x256xi32>
    %20 = arith.sitofp %19 : vector<1x256xi32> to vector<1x256xf32>
    %c15_i32 = arith.constant 15 : i32
    %21 = vector.broadcast %c15_i32 : i32 to vector<1x256xi32>
    %22 = arith.cmpi ne, %16, %21 : vector<1x256xi32>
    %23 = arith.extui %22 : vector<1x256xi1> to vector<1x256xi32>
    %24 = arith.sitofp %23 : vector<1x256xi32> to vector<1x256xf32>
    %cst = arith.constant 0.000000e+00 : f32
    %25 = vector.broadcast %cst : f32 to vector<4x17xf32>
    %cst_4 = arith.constant 1.000000e+00 : f32
    %26 = vector.broadcast %cst_4 : f32 to vector<256x1xf32>
    %c0 = arith.constant 0 : index
    %c0_5 = arith.constant 0 : index
    %c0_6 = arith.constant 0 : index
    %27 = vector.load %arg0[%c0, %c0_5, %c0_6] : memref<2x4x256xf32, #tpu.memory_space<vmem>>, vector<1x4x256xf32>
    %28 = vector.shape_cast %27 : vector<1x4x256xf32> to vector<4x256xf32>
    %c1 = arith.constant 1 : index
    %c0_7 = arith.constant 0 : index
    %c0_8 = arith.constant 0 : index
    %29 = vector.load %arg0[%c1, %c0_7, %c0_8] : memref<2x4x256xf32, #tpu.memory_space<vmem>>, vector<1x4x256xf32>
    %30 = vector.shape_cast %29 : vector<1x4x256xf32> to vector<4x256xf32>
    %c0_9 = arith.constant 0 : index
    %c0_10 = arith.constant 0 : index
    %31 = vector.load %arg1[%c0_9, %c0_10] : memref<4x36xbf16, #tpu.memory_space<vmem>>, vector<4x36xbf16>
    %32 = tpu.concatenate %25, %28, %25 in 1 : vector<4x17xf32>, vector<4x256xf32>, vector<4x17xf32> -> vector<4x290xf32>
    %33 = vector.extract_strided_slice %32 {offsets = [0, 0], sizes = [4, 256], strides = [1, 1]} : vector<4x290xf32> to vector<4x256xf32>
    %34 = vector.broadcast %20 : vector<1x256xf32> to vector<4x256xf32>
    %35 = arith.mulf %33, %34 : vector<4x256xf32>
    %36 = arith.truncf %35 : vector<4x256xf32> to vector<4x256xbf16>
    %c0_11 = arith.constant 0 : index
    %c0_12 = arith.constant 0 : index
    %37 = vector.load %arg8[%c0_11, %c0_12] : memref<36x256xbf16, #tpu.memory_space<vmem>>, vector<4x256xbf16>
    tpu.vector_store %arg8[%c0_11, %c0_12], %36 {strides = array<i32>} : memref<36x256xbf16, #tpu.memory_space<vmem>>, vector<4x256xbf16>,
    %38 = vector.extract_strided_slice %32 {offsets = [0, 1], sizes = [4, 256], strides = [1, 1]} : vector<4x290xf32> to vector<4x256xf32>
    %39 = arith.truncf %38 : vector<4x256xf32> to vector<4x256xbf16>
    %c4 = arith.constant 4 : index
    %c0_13 = arith.constant 0 : index
    %40 = vector.load %arg8[%c4, %c0_13] : memref<36x256xbf16, #tpu.memory_space<vmem>>, vector<4x256xbf16>
    tpu.vector_store %arg8[%c4, %c0_13], %39 {strides = array<i32>} : memref<36x256xbf16, #tpu.memory_space<vmem>>, vector<4x256xbf16>,
    %41 = vector.extract_strided_slice %32 {offsets = [0, 2], sizes = [4, 256], strides = [1, 1]} : vector<4x290xf32> to vector<4x256xf32>
    %42 = vector.broadcast %24 : vector<1x256xf32> to vector<4x256xf32>
    %43 = arith.mulf %41, %42 : vector<4x256xf32>
    %44 = arith.truncf %43 : vector<4x256xf32> to vector<4x256xbf16>
    %c8 = arith.constant 8 : index
    %c0_14 = arith.constant 0 : index
    %45 = vector.load %arg8[%c8, %c0_14] : memref<36x256xbf16, #tpu.memory_space<vmem>>, vector<4x256xbf16>
    tpu.vector_store %arg8[%c8, %c0_14], %44 {strides = array<i32>} : memref<36x256xbf16, #tpu.memory_space<vmem>>, vector<4x256xbf16>,
    %46 = vector.extract_strided_slice %32 {offsets = [0, 16], sizes = [4, 256], strides = [1, 1]} : vector<4x290xf32> to vector<4x256xf32>
    %47 = vector.broadcast %20 : vector<1x256xf32> to vector<4x256xf32>
    %48 = arith.mulf %46, %47 : vector<4x256xf32>
    %49 = arith.truncf %48 : vector<4x256xf32> to vector<4x256xbf16>
    %c12 = arith.constant 12 : index
    %c0_15 = arith.constant 0 : index
    %50 = vector.load %arg8[%c12, %c0_15] : memref<36x256xbf16, #tpu.memory_space<vmem>>, vector<4x256xbf16>
    tpu.vector_store %arg8[%c12, %c0_15], %49 {strides = array<i32>} : memref<36x256xbf16, #tpu.memory_space<vmem>>, vector<4x256xbf16>,
    %51 = vector.extract_strided_slice %32 {offsets = [0, 17], sizes = [4, 256], strides = [1, 1]} : vector<4x290xf32> to vector<4x256xf32>
    %52 = arith.truncf %51 : vector<4x256xf32> to vector<4x256xbf16>
    %c16 = arith.constant 16 : index
    %c0_16 = arith.constant 0 : index
    %53 = vector.load %arg8[%c16, %c0_16] : memref<36x256xbf16, #tpu.memory_space<vmem>>, vector<4x256xbf16>
    tpu.vector_store %arg8[%c16, %c0_16], %52 {strides = array<i32>} : memref<36x256xbf16, #tpu.memory_space<vmem>>, vector<4x256xbf16>,
    %54 = vector.extract_strided_slice %32 {offsets = [0, 18], sizes = [4, 256], strides = [1, 1]} : vector<4x290xf32> to vector<4x256xf32>
    %55 = vector.broadcast %24 : vector<1x256xf32> to vector<4x256xf32>
    %56 = arith.mulf %54, %55 : vector<4x256xf32>
    %57 = arith.truncf %56 : vector<4x256xf32> to vector<4x256xbf16>
    %c20 = arith.constant 20 : index
    %c0_17 = arith.constant 0 : index
    %58 = vector.load %arg8[%c20, %c0_17] : memref<36x256xbf16, #tpu.memory_space<vmem>>, vector<4x256xbf16>
    tpu.vector_store %arg8[%c20, %c0_17], %57 {strides = array<i32>} : memref<36x256xbf16, #tpu.memory_space<vmem>>, vector<4x256xbf16>,
    %59 = vector.extract_strided_slice %32 {offsets = [0, 32], sizes = [4, 256], strides = [1, 1]} : vector<4x290xf32> to vector<4x256xf32>
    %60 = vector.broadcast %20 : vector<1x256xf32> to vector<4x256xf32>
    %61 = arith.mulf %59, %60 : vector<4x256xf32>
    %62 = arith.truncf %61 : vector<4x256xf32> to vector<4x256xbf16>
    %c24 = arith.constant 24 : index
    %c0_18 = arith.constant 0 : index
    %63 = vector.load %arg8[%c24, %c0_18] : memref<36x256xbf16, #tpu.memory_space<vmem>>, vector<4x256xbf16>
    tpu.vector_store %arg8[%c24, %c0_18], %62 {strides = array<i32>} : memref<36x256xbf16, #tpu.memory_space<vmem>>, vector<4x256xbf16>,
    %64 = vector.extract_strided_slice %32 {offsets = [0, 33], sizes = [4, 256], strides = [1, 1]} : vector<4x290xf32> to vector<4x256xf32>
    %65 = arith.truncf %64 : vector<4x256xf32> to vector<4x256xbf16>
    %c28 = arith.constant 28 : index
    %c0_19 = arith.constant 0 : index
    %66 = vector.load %arg8[%c28, %c0_19] : memref<36x256xbf16, #tpu.memory_space<vmem>>, vector<4x256xbf16>
    tpu.vector_store %arg8[%c28, %c0_19], %65 {strides = array<i32>} : memref<36x256xbf16, #tpu.memory_space<vmem>>, vector<4x256xbf16>,
    %67 = vector.extract_strided_slice %32 {offsets = [0, 34], sizes = [4, 256], strides = [1, 1]} : vector<4x290xf32> to vector<4x256xf32>
    %68 = vector.broadcast %24 : vector<1x256xf32> to vector<4x256xf32>
    %69 = arith.mulf %67, %68 : vector<4x256xf32>
    %70 = arith.truncf %69 : vector<4x256xf32> to vector<4x256xbf16>
    %c32 = arith.constant 32 : index
    %c0_20 = arith.constant 0 : index
    %71 = vector.load %arg8[%c32, %c0_20] : memref<36x256xbf16, #tpu.memory_space<vmem>>, vector<4x256xbf16>
    tpu.vector_store %arg8[%c32, %c0_20], %70 {strides = array<i32>} : memref<36x256xbf16, #tpu.memory_space<vmem>>, vector<4x256xbf16>,
    %c0_21 = arith.constant 0 : index
    %c0_22 = arith.constant 0 : index
    %72 = vector.load %arg8[%c0_21, %c0_22] : memref<36x256xbf16, #tpu.memory_space<vmem>>, vector<36x256xbf16>
    %cst_23 = arith.constant dense<0.000000e+00> : vector<4x256xf32>
    %73 = tpu.matmul %31, %72, %cst_23 {dimension_numbers = #tpu.dot_dimension_numbers<[1], [0], [0], [1], [0, 0, 1, 1], [], []>} : vector<4x36xbf16>, vector<36x256xbf16>, vector<4x256xf32> -> vector<4x256xf32>
    %74 = tpu.concatenate %25, %30, %25 in 1 : vector<4x17xf32>, vector<4x256xf32>, vector<4x17xf32> -> vector<4x290xf32>
    %75 = vector.extract_strided_slice %74 {offsets = [0, 0], sizes = [4, 256], strides = [1, 1]} : vector<4x290xf32> to vector<4x256xf32>
    %76 = vector.broadcast %20 : vector<1x256xf32> to vector<4x256xf32>
    %77 = arith.mulf %75, %76 : vector<4x256xf32>
    %78 = arith.truncf %77 : vector<4x256xf32> to vector<4x256xbf16>
    %c0_24 = arith.constant 0 : index
    %c0_25 = arith.constant 0 : index
    %79 = vector.load %arg8[%c0_24, %c0_25] : memref<36x256xbf16, #tpu.memory_space<vmem>>, vector<4x256xbf16>
    tpu.vector_store %arg8[%c0_24, %c0_25], %78 {strides = array<i32>} : memref<36x256xbf16, #tpu.memory_space<vmem>>, vector<4x256xbf16>,
    %80 = vector.extract_strided_slice %74 {offsets = [0, 1], sizes = [4, 256], strides = [1, 1]} : vector<4x290xf32> to vector<4x256xf32>
    %81 = arith.truncf %80 : vector<4x256xf32> to vector<4x256xbf16>
    %c4_26 = arith.constant 4 : index
    %c0_27 = arith.constant 0 : index
    %82 = vector.load %arg8[%c4_26, %c0_27] : memref<36x256xbf16, #tpu.memory_space<vmem>>, vector<4x256xbf16>
    tpu.vector_store %arg8[%c4_26, %c0_27], %81 {strides = array<i32>} : memref<36x256xbf16, #tpu.memory_space<vmem>>, vector<4x256xbf16>,
    %83 = vector.extract_strided_slice %74 {offsets = [0, 2], sizes = [4, 256], strides = [1, 1]} : vector<4x290xf32> to vector<4x256xf32>
    %84 = vector.broadcast %24 : vector<1x256xf32> to vector<4x256xf32>
    %85 = arith.mulf %83, %84 : vector<4x256xf32>
    %86 = arith.truncf %85 : vector<4x256xf32> to vector<4x256xbf16>
    %c8_28 = arith.constant 8 : index
    %c0_29 = arith.constant 0 : index
    %87 = vector.load %arg8[%c8_28, %c0_29] : memref<36x256xbf16, #tpu.memory_space<vmem>>, vector<4x256xbf16>
    tpu.vector_store %arg8[%c8_28, %c0_29], %86 {strides = array<i32>} : memref<36x256xbf16, #tpu.memory_space<vmem>>, vector<4x256xbf16>,
    %88 = vector.extract_strided_slice %74 {offsets = [0, 16], sizes = [4, 256], strides = [1, 1]} : vector<4x290xf32> to vector<4x256xf32>
    %89 = vector.broadcast %20 : vector<1x256xf32> to vector<4x256xf32>
    %90 = arith.mulf %88, %89 : vector<4x256xf32>
    %91 = arith.truncf %90 : vector<4x256xf32> to vector<4x256xbf16>
    %c12_30 = arith.constant 12 : index
    %c0_31 = arith.constant 0 : index
    %92 = vector.load %arg8[%c12_30, %c0_31] : memref<36x256xbf16, #tpu.memory_space<vmem>>, vector<4x256xbf16>
    tpu.vector_store %arg8[%c12_30, %c0_31], %91 {strides = array<i32>} : memref<36x256xbf16, #tpu.memory_space<vmem>>, vector<4x256xbf16>,
    %93 = vector.extract_strided_slice %74 {offsets = [0, 17], sizes = [4, 256], strides = [1, 1]} : vector<4x290xf32> to vector<4x256xf32>
    %94 = arith.truncf %93 : vector<4x256xf32> to vector<4x256xbf16>
    %c16_32 = arith.constant 16 : index
    %c0_33 = arith.constant 0 : index
    %95 = vector.load %arg8[%c16_32, %c0_33] : memref<36x256xbf16, #tpu.memory_space<vmem>>, vector<4x256xbf16>
    tpu.vector_store %arg8[%c16_32, %c0_33], %94 {strides = array<i32>} : memref<36x256xbf16, #tpu.memory_space<vmem>>, vector<4x256xbf16>,
    %96 = vector.extract_strided_slice %74 {offsets = [0, 18], sizes = [4, 256], strides = [1, 1]} : vector<4x290xf32> to vector<4x256xf32>
    %97 = vector.broadcast %24 : vector<1x256xf32> to vector<4x256xf32>
    %98 = arith.mulf %96, %97 : vector<4x256xf32>
    %99 = arith.truncf %98 : vector<4x256xf32> to vector<4x256xbf16>
    %c20_34 = arith.constant 20 : index
    %c0_35 = arith.constant 0 : index
    %100 = vector.load %arg8[%c20_34, %c0_35] : memref<36x256xbf16, #tpu.memory_space<vmem>>, vector<4x256xbf16>
    tpu.vector_store %arg8[%c20_34, %c0_35], %99 {strides = array<i32>} : memref<36x256xbf16, #tpu.memory_space<vmem>>, vector<4x256xbf16>,
    %101 = vector.extract_strided_slice %74 {offsets = [0, 32], sizes = [4, 256], strides = [1, 1]} : vector<4x290xf32> to vector<4x256xf32>
    %102 = vector.broadcast %20 : vector<1x256xf32> to vector<4x256xf32>
    %103 = arith.mulf %101, %102 : vector<4x256xf32>
    %104 = arith.truncf %103 : vector<4x256xf32> to vector<4x256xbf16>
    %c24_36 = arith.constant 24 : index
    %c0_37 = arith.constant 0 : index
    %105 = vector.load %arg8[%c24_36, %c0_37] : memref<36x256xbf16, #tpu.memory_space<vmem>>, vector<4x256xbf16>
    tpu.vector_store %arg8[%c24_36, %c0_37], %104 {strides = array<i32>} : memref<36x256xbf16, #tpu.memory_space<vmem>>, vector<4x256xbf16>,
    %106 = vector.extract_strided_slice %74 {offsets = [0, 33], sizes = [4, 256], strides = [1, 1]} : vector<4x290xf32> to vector<4x256xf32>
    %107 = arith.truncf %106 : vector<4x256xf32> to vector<4x256xbf16>
    %c28_38 = arith.constant 28 : index
    %c0_39 = arith.constant 0 : index
    %108 = vector.load %arg8[%c28_38, %c0_39] : memref<36x256xbf16, #tpu.memory_space<vmem>>, vector<4x256xbf16>
    tpu.vector_store %arg8[%c28_38, %c0_39], %107 {strides = array<i32>} : memref<36x256xbf16, #tpu.memory_space<vmem>>, vector<4x256xbf16>,
    %109 = vector.extract_strided_slice %74 {offsets = [0, 34], sizes = [4, 256], strides = [1, 1]} : vector<4x290xf32> to vector<4x256xf32>
    %110 = vector.broadcast %24 : vector<1x256xf32> to vector<4x256xf32>
    %111 = arith.mulf %109, %110 : vector<4x256xf32>
    %112 = arith.truncf %111 : vector<4x256xf32> to vector<4x256xbf16>
    %c32_40 = arith.constant 32 : index
    %c0_41 = arith.constant 0 : index
    %113 = vector.load %arg8[%c32_40, %c0_41] : memref<36x256xbf16, #tpu.memory_space<vmem>>, vector<4x256xbf16>
    tpu.vector_store %arg8[%c32_40, %c0_41], %112 {strides = array<i32>} : memref<36x256xbf16, #tpu.memory_space<vmem>>, vector<4x256xbf16>,
    %c0_42 = arith.constant 0 : index
    %c0_43 = arith.constant 0 : index
    %114 = vector.load %arg8[%c0_42, %c0_43] : memref<36x256xbf16, #tpu.memory_space<vmem>>, vector<36x256xbf16>
    %cst_44 = arith.constant dense<0.000000e+00> : vector<4x256xf32>
    %115 = tpu.matmul %31, %114, %cst_44 {dimension_numbers = #tpu.dot_dimension_numbers<[1], [0], [0], [1], [0, 0, 1, 1], [], []>} : vector<4x36xbf16>, vector<36x256xbf16>, vector<4x256xf32> -> vector<4x256xf32>
    %cst_45 = arith.constant 0.000000e+00 : f32
    %116 = vector.broadcast %cst_45 : f32 to vector<4x1xf32>
    %cst_46 = arith.constant 0.000000e+00 : f32
    %117 = vector.broadcast %cst_46 : f32 to vector<4x1xf32>
    %cst_47 = arith.constant dense<0.000000e+00> : vector<4x1xf32>
    %118 = tpu.matmul %73, %26, %cst_47 {dimension_numbers = #tpu.dot_dimension_numbers<[1], [0], [0], [1], [0, 0, 1, 1], [], []>} : vector<4x256xf32>, vector<256x1xf32>, vector<4x1xf32> -> vector<4x1xf32>
    %119 = arith.addf %116, %118 : vector<4x1xf32>
    %120 = arith.mulf %73, %73 : vector<4x256xf32>
    %cst_48 = arith.constant dense<0.000000e+00> : vector<4x1xf32>
    %121 = tpu.matmul %120, %26, %cst_48 {dimension_numbers = #tpu.dot_dimension_numbers<[1], [0], [0], [1], [0, 0, 1, 1], [], []>} : vector<4x256xf32>, vector<256x1xf32>, vector<4x1xf32> -> vector<4x1xf32>
    %122 = arith.addf %117, %121 : vector<4x1xf32>
    %cst_49 = arith.constant dense<0.000000e+00> : vector<4x1xf32>
    %123 = tpu.matmul %115, %26, %cst_49 {dimension_numbers = #tpu.dot_dimension_numbers<[1], [0], [0], [1], [0, 0, 1, 1], [], []>} : vector<4x256xf32>, vector<256x1xf32>, vector<4x1xf32> -> vector<4x1xf32>
    %124 = arith.addf %119, %123 : vector<4x1xf32>
    %125 = arith.mulf %115, %115 : vector<4x256xf32>
    %cst_50 = arith.constant dense<0.000000e+00> : vector<4x1xf32>
    %126 = tpu.matmul %125, %26, %cst_50 {dimension_numbers = #tpu.dot_dimension_numbers<[1], [0], [0], [1], [0, 0, 1, 1], [], []>} : vector<4x256xf32>, vector<256x1xf32>, vector<4x1xf32> -> vector<4x1xf32>
    %127 = arith.addf %122, %126 : vector<4x1xf32>
    %cst_51 = arith.constant 0.001953125 : f32
    %128 = vector.broadcast %cst_51 : f32 to vector<4x1xf32>
    %129 = arith.mulf %124, %128 : vector<4x1xf32>
    %cst_52 = arith.constant 0.001953125 : f32
    %130 = vector.broadcast %cst_52 : f32 to vector<4x1xf32>
    %131 = arith.mulf %127, %130 : vector<4x1xf32>
    %132 = arith.mulf %129, %129 : vector<4x1xf32>
    %133 = arith.subf %131, %132 : vector<4x1xf32>
    %c0_53 = arith.constant 0 : index
    %c0_54 = arith.constant 0 : index
    %134 = vector.load %arg2[%c0_53, %c0_54] : memref<4x1xf32, #tpu.memory_space<vmem>>, vector<4x1xf32>
    %cst_55 = arith.constant 9.99999974E-6 : f32
    %135 = vector.broadcast %cst_55 : f32 to vector<4x1xf32>
    %136 = arith.addf %133, %135 : vector<4x1xf32>
    %137 = math.rsqrt %136 : vector<4x1xf32>
    %138 = arith.mulf %134, %137 : vector<4x1xf32>
    %c0_56 = arith.constant 0 : index
    %c0_57 = arith.constant 0 : index
    %139 = vector.load %arg3[%c0_56, %c0_57] : memref<4x1xf32, #tpu.memory_space<vmem>>, vector<4x1xf32>
    %140 = arith.mulf %129, %138 : vector<4x1xf32>
    %141 = arith.subf %139, %140 : vector<4x1xf32>
    %142 = vector.broadcast %138 : vector<4x1xf32> to vector<4x256xf32>
    %143 = arith.mulf %73, %142 : vector<4x256xf32>
    %144 = vector.broadcast %141 : vector<4x1xf32> to vector<4x256xf32>
    %145 = arith.addf %143, %144 : vector<4x256xf32>
    %146 = vector.broadcast %138 : vector<4x1xf32> to vector<4x256xf32>
    %147 = arith.mulf %115, %146 : vector<4x256xf32>
    %148 = vector.broadcast %141 : vector<4x1xf32> to vector<4x256xf32>
    %149 = arith.addf %147, %148 : vector<4x256xf32>
    %cst_58 = arith.constant 0.000000e+00 : f32
    %150 = vector.broadcast %cst_58 : f32 to vector<4x256xf32>
    %151 = arith.maximumf %145, %150 : vector<4x256xf32>
    %cst_59 = arith.constant 0.000000e+00 : f32
    %152 = vector.broadcast %cst_59 : f32 to vector<4x256xf32>
    %153 = arith.maximumf %149, %152 : vector<4x256xf32>
    %c0_60 = arith.constant 0 : index
    %c0_61 = arith.constant 0 : index
    %154 = vector.load %arg4[%c0_60, %c0_61] : memref<4x36xbf16, #tpu.memory_space<vmem>>, vector<4x36xbf16>
    %155 = tpu.concatenate %25, %151, %25 in 1 : vector<4x17xf32>, vector<4x256xf32>, vector<4x17xf32> -> vector<4x290xf32>
    %156 = vector.extract_strided_slice %155 {offsets = [0, 0], sizes = [4, 256], strides = [1, 1]} : vector<4x290xf32> to vector<4x256xf32>
    %157 = vector.broadcast %20 : vector<1x256xf32> to vector<4x256xf32>
    %158 = arith.mulf %156, %157 : vector<4x256xf32>
    %159 = arith.truncf %158 : vector<4x256xf32> to vector<4x256xbf16>
    %c0_62 = arith.constant 0 : index
    %c0_63 = arith.constant 0 : index
    %160 = vector.load %arg8[%c0_62, %c0_63] : memref<36x256xbf16, #tpu.memory_space<vmem>>, vector<4x256xbf16>
    tpu.vector_store %arg8[%c0_62, %c0_63], %159 {strides = array<i32>} : memref<36x256xbf16, #tpu.memory_space<vmem>>, vector<4x256xbf16>,
    %161 = vector.extract_strided_slice %155 {offsets = [0, 1], sizes = [4, 256], strides = [1, 1]} : vector<4x290xf32> to vector<4x256xf32>
    %162 = arith.truncf %161 : vector<4x256xf32> to vector<4x256xbf16>
    %c4_64 = arith.constant 4 : index
    %c0_65 = arith.constant 0 : index
    %163 = vector.load %arg8[%c4_64, %c0_65] : memref<36x256xbf16, #tpu.memory_space<vmem>>, vector<4x256xbf16>
    tpu.vector_store %arg8[%c4_64, %c0_65], %162 {strides = array<i32>} : memref<36x256xbf16, #tpu.memory_space<vmem>>, vector<4x256xbf16>,
    %164 = vector.extract_strided_slice %155 {offsets = [0, 2], sizes = [4, 256], strides = [1, 1]} : vector<4x290xf32> to vector<4x256xf32>
    %165 = vector.broadcast %24 : vector<1x256xf32> to vector<4x256xf32>
    %166 = arith.mulf %164, %165 : vector<4x256xf32>
    %167 = arith.truncf %166 : vector<4x256xf32> to vector<4x256xbf16>
    %c8_66 = arith.constant 8 : index
    %c0_67 = arith.constant 0 : index
    %168 = vector.load %arg8[%c8_66, %c0_67] : memref<36x256xbf16, #tpu.memory_space<vmem>>, vector<4x256xbf16>
    tpu.vector_store %arg8[%c8_66, %c0_67], %167 {strides = array<i32>} : memref<36x256xbf16, #tpu.memory_space<vmem>>, vector<4x256xbf16>,
    %169 = vector.extract_strided_slice %155 {offsets = [0, 16], sizes = [4, 256], strides = [1, 1]} : vector<4x290xf32> to vector<4x256xf32>
    %170 = vector.broadcast %20 : vector<1x256xf32> to vector<4x256xf32>
    %171 = arith.mulf %169, %170 : vector<4x256xf32>
    %172 = arith.truncf %171 : vector<4x256xf32> to vector<4x256xbf16>
    %c12_68 = arith.constant 12 : index
    %c0_69 = arith.constant 0 : index
    %173 = vector.load %arg8[%c12_68, %c0_69] : memref<36x256xbf16, #tpu.memory_space<vmem>>, vector<4x256xbf16>
    tpu.vector_store %arg8[%c12_68, %c0_69], %172 {strides = array<i32>} : memref<36x256xbf16, #tpu.memory_space<vmem>>, vector<4x256xbf16>,
    %174 = vector.extract_strided_slice %155 {offsets = [0, 17], sizes = [4, 256], strides = [1, 1]} : vector<4x290xf32> to vector<4x256xf32>
    %175 = arith.truncf %174 : vector<4x256xf32> to vector<4x256xbf16>
    %c16_70 = arith.constant 16 : index
    %c0_71 = arith.constant 0 : index
    %176 = vector.load %arg8[%c16_70, %c0_71] : memref<36x256xbf16, #tpu.memory_space<vmem>>, vector<4x256xbf16>
    tpu.vector_store %arg8[%c16_70, %c0_71], %175 {strides = array<i32>} : memref<36x256xbf16, #tpu.memory_space<vmem>>, vector<4x256xbf16>,
    %177 = vector.extract_strided_slice %155 {offsets = [0, 18], sizes = [4, 256], strides = [1, 1]} : vector<4x290xf32> to vector<4x256xf32>
    %178 = vector.broadcast %24 : vector<1x256xf32> to vector<4x256xf32>
    %179 = arith.mulf %177, %178 : vector<4x256xf32>
    %180 = arith.truncf %179 : vector<4x256xf32> to vector<4x256xbf16>
    %c20_72 = arith.constant 20 : index
    %c0_73 = arith.constant 0 : index
    %181 = vector.load %arg8[%c20_72, %c0_73] : memref<36x256xbf16, #tpu.memory_space<vmem>>, vector<4x256xbf16>
    tpu.vector_store %arg8[%c20_72, %c0_73], %180 {strides = array<i32>} : memref<36x256xbf16, #tpu.memory_space<vmem>>, vector<4x256xbf16>,
    %182 = vector.extract_strided_slice %155 {offsets = [0, 32], sizes = [4, 256], strides = [1, 1]} : vector<4x290xf32> to vector<4x256xf32>
    %183 = vector.broadcast %20 : vector<1x256xf32> to vector<4x256xf32>
    %184 = arith.mulf %182, %183 : vector<4x256xf32>
    %185 = arith.truncf %184 : vector<4x256xf32> to vector<4x256xbf16>
    %c24_74 = arith.constant 24 : index
    %c0_75 = arith.constant 0 : index
    %186 = vector.load %arg8[%c24_74, %c0_75] : memref<36x256xbf16, #tpu.memory_space<vmem>>, vector<4x256xbf16>
    tpu.vector_store %arg8[%c24_74, %c0_75], %185 {strides = array<i32>} : memref<36x256xbf16, #tpu.memory_space<vmem>>, vector<4x256xbf16>,
    %187 = vector.extract_strided_slice %155 {offsets = [0, 33], sizes = [4, 256], strides = [1, 1]} : vector<4x290xf32> to vector<4x256xf32>
    %188 = arith.truncf %187 : vector<4x256xf32> to vector<4x256xbf16>
    %c28_76 = arith.constant 28 : index
    %c0_77 = arith.constant 0 : index
    %189 = vector.load %arg8[%c28_76, %c0_77] : memref<36x256xbf16, #tpu.memory_space<vmem>>, vector<4x256xbf16>
    tpu.vector_store %arg8[%c28_76, %c0_77], %188 {strides = array<i32>} : memref<36x256xbf16, #tpu.memory_space<vmem>>, vector<4x256xbf16>,
    %190 = vector.extract_strided_slice %155 {offsets = [0, 34], sizes = [4, 256], strides = [1, 1]} : vector<4x290xf32> to vector<4x256xf32>
    %191 = vector.broadcast %24 : vector<1x256xf32> to vector<4x256xf32>
    %192 = arith.mulf %190, %191 : vector<4x256xf32>
    %193 = arith.truncf %192 : vector<4x256xf32> to vector<4x256xbf16>
    %c32_78 = arith.constant 32 : index
    %c0_79 = arith.constant 0 : index
    %194 = vector.load %arg8[%c32_78, %c0_79] : memref<36x256xbf16, #tpu.memory_space<vmem>>, vector<4x256xbf16>
    tpu.vector_store %arg8[%c32_78, %c0_79], %193 {strides = array<i32>} : memref<36x256xbf16, #tpu.memory_space<vmem>>, vector<4x256xbf16>,
    %c0_80 = arith.constant 0 : index
    %c0_81 = arith.constant 0 : index
    %195 = vector.load %arg8[%c0_80, %c0_81] : memref<36x256xbf16, #tpu.memory_space<vmem>>, vector<36x256xbf16>
    %cst_82 = arith.constant dense<0.000000e+00> : vector<4x256xf32>
    %196 = tpu.matmul %154, %195, %cst_82 {dimension_numbers = #tpu.dot_dimension_numbers<[1], [0], [0], [1], [0, 0, 1, 1], [], []>} : vector<4x36xbf16>, vector<36x256xbf16>, vector<4x256xf32> -> vector<4x256xf32>
    %197 = tpu.concatenate %25, %153, %25 in 1 : vector<4x17xf32>, vector<4x256xf32>, vector<4x17xf32> -> vector<4x290xf32>
    %198 = vector.extract_strided_slice %197 {offsets = [0, 0], sizes = [4, 256], strides = [1, 1]} : vector<4x290xf32> to vector<4x256xf32>
    %199 = vector.broadcast %20 : vector<1x256xf32> to vector<4x256xf32>
    %200 = arith.mulf %198, %199 : vector<4x256xf32>
    %201 = arith.truncf %200 : vector<4x256xf32> to vector<4x256xbf16>
    %c0_83 = arith.constant 0 : index
    %c0_84 = arith.constant 0 : index
    %202 = vector.load %arg8[%c0_83, %c0_84] : memref<36x256xbf16, #tpu.memory_space<vmem>>, vector<4x256xbf16>
    tpu.vector_store %arg8[%c0_83, %c0_84], %201 {strides = array<i32>} : memref<36x256xbf16, #tpu.memory_space<vmem>>, vector<4x256xbf16>,
    %203 = vector.extract_strided_slice %197 {offsets = [0, 1], sizes = [4, 256], strides = [1, 1]} : vector<4x290xf32> to vector<4x256xf32>
    %204 = arith.truncf %203 : vector<4x256xf32> to vector<4x256xbf16>
    %c4_85 = arith.constant 4 : index
    %c0_86 = arith.constant 0 : index
    %205 = vector.load %arg8[%c4_85, %c0_86] : memref<36x256xbf16, #tpu.memory_space<vmem>>, vector<4x256xbf16>
    tpu.vector_store %arg8[%c4_85, %c0_86], %204 {strides = array<i32>} : memref<36x256xbf16, #tpu.memory_space<vmem>>, vector<4x256xbf16>,
    %206 = vector.extract_strided_slice %197 {offsets = [0, 2], sizes = [4, 256], strides = [1, 1]} : vector<4x290xf32> to vector<4x256xf32>
    %207 = vector.broadcast %24 : vector<1x256xf32> to vector<4x256xf32>
    %208 = arith.mulf %206, %207 : vector<4x256xf32>
    %209 = arith.truncf %208 : vector<4x256xf32> to vector<4x256xbf16>
    %c8_87 = arith.constant 8 : index
    %c0_88 = arith.constant 0 : index
    %210 = vector.load %arg8[%c8_87, %c0_88] : memref<36x256xbf16, #tpu.memory_space<vmem>>, vector<4x256xbf16>
    tpu.vector_store %arg8[%c8_87, %c0_88], %209 {strides = array<i32>} : memref<36x256xbf16, #tpu.memory_space<vmem>>, vector<4x256xbf16>,
    %211 = vector.extract_strided_slice %197 {offsets = [0, 16], sizes = [4, 256], strides = [1, 1]} : vector<4x290xf32> to vector<4x256xf32>
    %212 = vector.broadcast %20 : vector<1x256xf32> to vector<4x256xf32>
    %213 = arith.mulf %211, %212 : vector<4x256xf32>
    %214 = arith.truncf %213 : vector<4x256xf32> to vector<4x256xbf16>
    %c12_89 = arith.constant 12 : index
    %c0_90 = arith.constant 0 : index
    %215 = vector.load %arg8[%c12_89, %c0_90] : memref<36x256xbf16, #tpu.memory_space<vmem>>, vector<4x256xbf16>
    tpu.vector_store %arg8[%c12_89, %c0_90], %214 {strides = array<i32>} : memref<36x256xbf16, #tpu.memory_space<vmem>>, vector<4x256xbf16>,
    %216 = vector.extract_strided_slice %197 {offsets = [0, 17], sizes = [4, 256], strides = [1, 1]} : vector<4x290xf32> to vector<4x256xf32>
    %217 = arith.truncf %216 : vector<4x256xf32> to vector<4x256xbf16>
    %c16_91 = arith.constant 16 : index
    %c0_92 = arith.constant 0 : index
    %218 = vector.load %arg8[%c16_91, %c0_92] : memref<36x256xbf16, #tpu.memory_space<vmem>>, vector<4x256xbf16>
    tpu.vector_store %arg8[%c16_91, %c0_92], %217 {strides = array<i32>} : memref<36x256xbf16, #tpu.memory_space<vmem>>, vector<4x256xbf16>,
    %219 = vector.extract_strided_slice %197 {offsets = [0, 18], sizes = [4, 256], strides = [1, 1]} : vector<4x290xf32> to vector<4x256xf32>
    %220 = vector.broadcast %24 : vector<1x256xf32> to vector<4x256xf32>
    %221 = arith.mulf %219, %220 : vector<4x256xf32>
    %222 = arith.truncf %221 : vector<4x256xf32> to vector<4x256xbf16>
    %c20_93 = arith.constant 20 : index
    %c0_94 = arith.constant 0 : index
    %223 = vector.load %arg8[%c20_93, %c0_94] : memref<36x256xbf16, #tpu.memory_space<vmem>>, vector<4x256xbf16>
    tpu.vector_store %arg8[%c20_93, %c0_94], %222 {strides = array<i32>} : memref<36x256xbf16, #tpu.memory_space<vmem>>, vector<4x256xbf16>,
    %224 = vector.extract_strided_slice %197 {offsets = [0, 32], sizes = [4, 256], strides = [1, 1]} : vector<4x290xf32> to vector<4x256xf32>
    %225 = vector.broadcast %20 : vector<1x256xf32> to vector<4x256xf32>
    %226 = arith.mulf %224, %225 : vector<4x256xf32>
    %227 = arith.truncf %226 : vector<4x256xf32> to vector<4x256xbf16>
    %c24_95 = arith.constant 24 : index
    %c0_96 = arith.constant 0 : index
    %228 = vector.load %arg8[%c24_95, %c0_96] : memref<36x256xbf16, #tpu.memory_space<vmem>>, vector<4x256xbf16>
    tpu.vector_store %arg8[%c24_95, %c0_96], %227 {strides = array<i32>} : memref<36x256xbf16, #tpu.memory_space<vmem>>, vector<4x256xbf16>,
    %229 = vector.extract_strided_slice %197 {offsets = [0, 33], sizes = [4, 256], strides = [1, 1]} : vector<4x290xf32> to vector<4x256xf32>
    %230 = arith.truncf %229 : vector<4x256xf32> to vector<4x256xbf16>
    %c28_97 = arith.constant 28 : index
    %c0_98 = arith.constant 0 : index
    %231 = vector.load %arg8[%c28_97, %c0_98] : memref<36x256xbf16, #tpu.memory_space<vmem>>, vector<4x256xbf16>
    tpu.vector_store %arg8[%c28_97, %c0_98], %230 {strides = array<i32>} : memref<36x256xbf16, #tpu.memory_space<vmem>>, vector<4x256xbf16>,
    %232 = vector.extract_strided_slice %197 {offsets = [0, 34], sizes = [4, 256], strides = [1, 1]} : vector<4x290xf32> to vector<4x256xf32>
    %233 = vector.broadcast %24 : vector<1x256xf32> to vector<4x256xf32>
    %234 = arith.mulf %232, %233 : vector<4x256xf32>
    %235 = arith.truncf %234 : vector<4x256xf32> to vector<4x256xbf16>
    %c32_99 = arith.constant 32 : index
    %c0_100 = arith.constant 0 : index
    %236 = vector.load %arg8[%c32_99, %c0_100] : memref<36x256xbf16, #tpu.memory_space<vmem>>, vector<4x256xbf16>
    tpu.vector_store %arg8[%c32_99, %c0_100], %235 {strides = array<i32>} : memref<36x256xbf16, #tpu.memory_space<vmem>>, vector<4x256xbf16>,
    %c0_101 = arith.constant 0 : index
    %c0_102 = arith.constant 0 : index
    %237 = vector.load %arg8[%c0_101, %c0_102] : memref<36x256xbf16, #tpu.memory_space<vmem>>, vector<36x256xbf16>
    %cst_103 = arith.constant dense<0.000000e+00> : vector<4x256xf32>
    %238 = tpu.matmul %154, %237, %cst_103 {dimension_numbers = #tpu.dot_dimension_numbers<[1], [0], [0], [1], [0, 0, 1, 1], [], []>} : vector<4x36xbf16>, vector<36x256xbf16>, vector<4x256xf32> -> vector<4x256xf32>
    %cst_104 = arith.constant 0.000000e+00 : f32
    %239 = vector.broadcast %cst_104 : f32 to vector<4x1xf32>
    %cst_105 = arith.constant 0.000000e+00 : f32
    %240 = vector.broadcast %cst_105 : f32 to vector<4x1xf32>
    %cst_106 = arith.constant dense<0.000000e+00> : vector<4x1xf32>
    %241 = tpu.matmul %196, %26, %cst_106 {dimension_numbers = #tpu.dot_dimension_numbers<[1], [0], [0], [1], [0, 0, 1, 1], [], []>} : vector<4x256xf32>, vector<256x1xf32>, vector<4x1xf32> -> vector<4x1xf32>
    %242 = arith.addf %239, %241 : vector<4x1xf32>
    %243 = arith.mulf %196, %196 : vector<4x256xf32>
    %cst_107 = arith.constant dense<0.000000e+00> : vector<4x1xf32>
    %244 = tpu.matmul %243, %26, %cst_107 {dimension_numbers = #tpu.dot_dimension_numbers<[1], [0], [0], [1], [0, 0, 1, 1], [], []>} : vector<4x256xf32>, vector<256x1xf32>, vector<4x1xf32> -> vector<4x1xf32>
    %245 = arith.addf %240, %244 : vector<4x1xf32>
    %cst_108 = arith.constant dense<0.000000e+00> : vector<4x1xf32>
    %246 = tpu.matmul %238, %26, %cst_108 {dimension_numbers = #tpu.dot_dimension_numbers<[1], [0], [0], [1], [0, 0, 1, 1], [], []>} : vector<4x256xf32>, vector<256x1xf32>, vector<4x1xf32> -> vector<4x1xf32>
    %247 = arith.addf %242, %246 : vector<4x1xf32>
    %248 = arith.mulf %238, %238 : vector<4x256xf32>
    %cst_109 = arith.constant dense<0.000000e+00> : vector<4x1xf32>
    %249 = tpu.matmul %248, %26, %cst_109 {dimension_numbers = #tpu.dot_dimension_numbers<[1], [0], [0], [1], [0, 0, 1, 1], [], []>} : vector<4x256xf32>, vector<256x1xf32>, vector<4x1xf32> -> vector<4x1xf32>
    %250 = arith.addf %245, %249 : vector<4x1xf32>
    %cst_110 = arith.constant 0.001953125 : f32
    %251 = vector.broadcast %cst_110 : f32 to vector<4x1xf32>
    %252 = arith.mulf %247, %251 : vector<4x1xf32>
    %cst_111 = arith.constant 0.001953125 : f32
    %253 = vector.broadcast %cst_111 : f32 to vector<4x1xf32>
    %254 = arith.mulf %250, %253 : vector<4x1xf32>
    %255 = arith.mulf %252, %252 : vector<4x1xf32>
    %256 = arith.subf %254, %255 : vector<4x1xf32>
    %c0_112 = arith.constant 0 : index
    %c0_113 = arith.constant 0 : index
    %257 = vector.load %arg5[%c0_112, %c0_113] : memref<4x1xf32, #tpu.memory_space<vmem>>, vector<4x1xf32>
    %cst_114 = arith.constant 9.99999974E-6 : f32
    %258 = vector.broadcast %cst_114 : f32 to vector<4x1xf32>
    %259 = arith.addf %256, %258 : vector<4x1xf32>
    %260 = math.rsqrt %259 : vector<4x1xf32>
    %261 = arith.mulf %257, %260 : vector<4x1xf32>
    %c0_115 = arith.constant 0 : index
    %c0_116 = arith.constant 0 : index
    %262 = vector.load %arg6[%c0_115, %c0_116] : memref<4x1xf32, #tpu.memory_space<vmem>>, vector<4x1xf32>
    %263 = arith.mulf %252, %261 : vector<4x1xf32>
    %264 = arith.subf %262, %263 : vector<4x1xf32>
    %265 = vector.broadcast %261 : vector<4x1xf32> to vector<4x256xf32>
    %266 = arith.mulf %196, %265 : vector<4x256xf32>
    %267 = vector.broadcast %264 : vector<4x1xf32> to vector<4x256xf32>
    %268 = arith.addf %266, %267 : vector<4x256xf32>
    %269 = vector.broadcast %261 : vector<4x1xf32> to vector<4x256xf32>
    %270 = arith.mulf %238, %269 : vector<4x256xf32>
    %271 = vector.broadcast %264 : vector<4x1xf32> to vector<4x256xf32>
    %272 = arith.addf %270, %271 : vector<4x256xf32>
    %273 = arith.addf %268, %28 : vector<4x256xf32>
    %cst_117 = arith.constant 0.000000e+00 : f32
    %274 = vector.broadcast %cst_117 : f32 to vector<4x256xf32>
    %275 = arith.maximumf %273, %274 : vector<4x256xf32>
    %c0_118 = arith.constant 0 : index
    %c0_119 = arith.constant 0 : index
    %c0_120 = arith.constant 0 : index
    %276 = vector.load %arg7[%c0_118, %c0_119, %c0_120] : memref<2x4x256xf32, #tpu.memory_space<vmem>>, vector<1x4x256xf32>
    %277 = vector.shape_cast %276 : vector<1x4x256xf32> to vector<4x256xf32>
    %278 = vector.shape_cast %275 : vector<4x256xf32> to vector<1x4x256xf32>
    tpu.vector_store %arg7[%c0_118, %c0_119, %c0_120], %278 {strides = array<i32>} : memref<2x4x256xf32, #tpu.memory_space<vmem>>, vector<1x4x256xf32>,
    %279 = arith.addf %272, %30 : vector<4x256xf32>
    %cst_121 = arith.constant 0.000000e+00 : f32
    %280 = vector.broadcast %cst_121 : f32 to vector<4x256xf32>
    %281 = arith.maximumf %279, %280 : vector<4x256xf32>
    %c1_122 = arith.constant 1 : index
    %c0_123 = arith.constant 0 : index
    %c0_124 = arith.constant 0 : index
    %282 = vector.load %arg7[%c1_122, %c0_123, %c0_124] : memref<2x4x256xf32, #tpu.memory_space<vmem>>, vector<1x4x256xf32>
    %283 = vector.shape_cast %282 : vector<1x4x256xf32> to vector<4x256xf32>
    %284 = vector.shape_cast %281 : vector<4x256xf32> to vector<1x4x256xf32>
    tpu.vector_store %arg7[%c1_122, %c0_123, %c0_124], %284 {strides = array<i32>} : memref<2x4x256xf32, #tpu.memory_space<vmem>>, vector<1x4x256xf32>,
    return
  }
}

</mosaic_0001>

<llo_original>
// kernel: basic_block_pallas.1
$region0: #{basic_block_pallas.1}
  #allocation0 [shape = 'u32[]', space=smem, size = 0x4, offset = 0x4, fixed_abs, tag = 'smem constant byte address 0x4 - core index']
  #allocation1 [shape = 'u32[144,128]{1,0:T(1,128)}', space=vmem, size = 0x12000, scoped, tag = 'internal scratch']
  #allocation2 [shape = 'bf16[36,256]{1,0:T(8,128)(2,1)}', space=vmem, size = 0x5000, scoped, tag = 'scratch operand']
  %s0 = inlined_call_operand.vmem [shape: f32[2,4,256], index: 0, kind: input, shape index: {}]
  %s1 = inlined_call_operand.vmem [shape: bf16[4,36], index: 1, kind: input, shape index: {}]
  %s2 = inlined_call_operand.vmem [shape: f32[4,1], index: 2, kind: input, shape index: {}]
  %s3 = inlined_call_operand.vmem [shape: f32[4,1], index: 3, kind: input, shape index: {}]
  %s4 = inlined_call_operand.vmem [shape: bf16[4,36], index: 4, kind: input, shape index: {}]
  %s5 = inlined_call_operand.vmem [shape: f32[4,1], index: 5, kind: input, shape index: {}]
  %s6 = inlined_call_operand.vmem [shape: f32[4,1], index: 6, kind: input, shape index: {}]
  %s7 = inlined_call_operand.vmem [shape: f32[2,4,256], index: 7, kind: output, shape index: {}]
  %s8 = sld [smem:[#allocation0]]
  $region38: #{basic_block_pallas.1} parent=0
    _
  %s10 = ssub.s32 1, %s8
  %s11 = scalar_select 0, %s10, %s8
  // Predicated region
  $region2: #{basic_block_pallas.1} parent=0 // pred_check
    _
  $region3: #{basic_block_pallas.1} parent=0 // pred_check_branch
    %13 = sbr.rel (0) target = $region5
  $region4: #{basic_block_pallas.1} parent=0 // pred_region
    _
  $region5: #{basic_block_pallas.1} parent=0 // pred_fallthru
    _
  // Predicated region
  $region6: #{basic_block_pallas.1} parent=0 // pred_check
    _
  $region7: #{basic_block_pallas.1} parent=0 // pred_check_branch
    %15 = sbr.rel (0) target = $region9
  $region8: #{basic_block_pallas.1} parent=0 // pred_region
    _
  $region9: #{basic_block_pallas.1} parent=0 // pred_fallthru
    _
  // Predicated region
  $region10: #{basic_block_pallas.1} parent=0 // pred_check
    _
  $region11: #{basic_block_pallas.1} parent=0 // pred_check_branch
    %17 = sbr.rel (0) target = $region13
  $region12: #{basic_block_pallas.1} parent=0 // pred_region
    _
  $region13: #{basic_block_pallas.1} parent=0 // pred_fallthru
    _
  // Predicated region
  $region14: #{basic_block_pallas.1} parent=0 // pred_check
    _
  $region15: #{basic_block_pallas.1} parent=0 // pred_check_branch
    %19 = sbr.rel (0) target = $region17
  $region16: #{basic_block_pallas.1} parent=0 // pred_region
    _
  $region17: #{basic_block_pallas.1} parent=0 // pred_fallthru
    _
  // Predicated region
  $region18: #{basic_block_pallas.1} parent=0 // pred_check
    _
  $region19: #{basic_block_pallas.1} parent=0 // pred_check_branch
    %21 = sbr.rel (0) target = $region21
  $region20: #{basic_block_pallas.1} parent=0 // pred_region
    _
  $region21: #{basic_block_pallas.1} parent=0 // pred_fallthru
    _
  // Predicated region
  $region22: #{basic_block_pallas.1} parent=0 // pred_check
    _
  $region23: #{basic_block_pallas.1} parent=0 // pred_check_branch
    %23 = sbr.rel (0) target = $region25
  $region24: #{basic_block_pallas.1} parent=0 // pred_region
    _
  $region25: #{basic_block_pallas.1} parent=0 // pred_fallthru
    _
  // Predicated region
  $region26: #{basic_block_pallas.1} parent=0 // pred_check
    _
  $region27: #{basic_block_pallas.1} parent=0 // pred_check_branch
    %25 = sbr.rel (0) target = $region29
  $region28: #{basic_block_pallas.1} parent=0 // pred_region
    _
  $region29: #{basic_block_pallas.1} parent=0 // pred_fallthru
    _
  %v27 = vlaneseq
  %v28 = vand.u32 %v27, 127
  %v29 = vadd.s32 %v28, 128
  %vm30 = vcmp.lt.s32.totalorder %v28, 0
  %v31 = vsub.s32 0, %v28
  %v32 = vsel %vm30, %v31, %v28
  %v33 = vshrl.u32 %v32, 4
  %v34 = vand.u32 %v32, 15
  %v35 = vsub.s32 0, %v34
  %v36 = vsel %vm30, %v35, %v34
  %vm37 = vcmp.lt.s32.totalorder %v29, 0
  %v38 = vsub.s32 0, %v29
  %v39 = vsel %vm37, %v38, %v29
  %v40 = vshrl.u32 %v39, 4
  %v41 = vand.u32 %v39, 15
  %v42 = vsub.s32 0, %v41
  %v43 = vsel %vm37, %v42, %v41
  %vm44 = vcmp.ne.s32.totalorder %v36, 0
  %vm45 = vcmp.ne.s32.totalorder %v43, 0
  %vm46 = vcmp.lt.s32.totalorder %v36, 0
  %vm47 = vcmp.lt.s32.totalorder %v43, 0
  %vm48 = vmand %vm46, %vm44
  %vm49 = vmand %vm47, %vm45
  %v50 = vadd.s32 %v36, 16
  %v51 = vadd.s32 %v43, 16
  %v52 = vsel %vm48, %v50, %v36
  %v53 = vsel %vm49, %v51, %v43
  %vm54 = vcmp.ne.s32.totalorder %v52, 0
  %vm55 = vcmp.ne.s32.totalorder %v53, 0
  %v56 = vsel %vm54, 1, 0
  %v57 = vsel %vm55, 1, 0
  %v58 = vcvt.s32.f32 %v56
  %v59 = vcvt.s32.f32 %v57
  %vm60 = vcmp.ne.s32.totalorder %v52, 15
  %vm61 = vcmp.ne.s32.totalorder %v53, 15
  %v62 = vsel %vm60, 1, 0
  %v63 = vsel %vm61, 1, 0
  %v64 = vcvt.s32.f32 %v62
  %v65 = vcvt.s32.f32 %v63
  %v66 = vld [vmem:[%s0] sm:$0xff]
  %s67 = scalar_lea.vmem %s0, 8
  %v68 = vld [vmem:[%s67] sm:$0xff]
  %v69 = vld [vmem:[%s1] sm:$0x3]
  %v71 = vcombine.high %v66, %v66
  %72 = vrot.lane.b32.xlu0 %v66, 17
  %v73 = vpop.permute.xlu0 %72
  %74 = vrot.lane.b32.xlu0 %v71, 17
  %v75 = vpop.permute.xlu0 %74
  %vm76 = vcmask 138240
  %v77 = vsel %vm76, %v73, %v75
  %v81 = vsel %vm76, 0.0, %v73
  %v82 = vsel %vm76, %v75, 0.0
  %v83 = vmul.f32 %v81, %v58
  %v84 = vmul.f32 %v77, %v59
  %v85 = vpack.c.bf16 %v83, %v83
  %v86 = vpack.c.bf16 %v84, %v84
  %v89 = vunpack.c.l.b16 %v85
  %v90 = vunpack.c.l.b16 %v86
  %v91 = vpack.c.b16 %v90, %v89
  %93 = vst [vmem:[#allocation2] sm:$0x33] %v91
  %v94 = vpack.c.bf16 %v81, %v81
  %v95 = vpack.c.bf16 %v77, %v77
  %v96 = vpack.c.bf16 %v82, %v82
  %v100 = vunpack.c.l.b16 %v94
  %v101 = vunpack.c.l.b16 %v95
  %v102 = vunpack.c.l.b16 %v96
  %v103 = vpack.c.b16 %v101, %v100
  %v104 = vpack.c.b16 %v102, %v102
  %v105 = vrot.slane %v103, 6
  %v106 = vrot.slane %v104, 6
  %107 = vrot.lane.b32.xlu0 %v105, 127
  %v108 = vpop.permute.xlu0 %107
  %109 = vrot.lane.b32.xlu0 %v106, 127
  %v110 = vpop.permute.xlu0 %109
  %v111 = vrot.slane %v108, 4
  %v112 = vrot.slane %v110, 4
  %vm113 = vcmask 1043456
  %v114 = vsel %vm113, %v111, %v112
  %vm115 = vcmask 1039360
  %v116 = vsel %vm115, %v108, %v114
  %118 = vst [vmem:[#allocation2] sm:$0xcc] %v116
  %121 = vrot.lane.b32.xlu0 %v64, 2
  %v122 = vpop.permute.xlu0 %121
  %123 = vrot.lane.b32.xlu0 %v65, 2
  %v124 = vpop.permute.xlu0 %123
  %vm125 = vcmask 15360
  %v126 = vsel %vm125, %v122, %v124
  %v130 = vmul.f32 %v81, %v122
  %v131 = vmul.f32 %v77, %v126
  %v132 = vmul.f32 %v82, %v124
  %v133 = vpack.c.bf16 %v130, %v130
  %v134 = vpack.c.bf16 %v131, %v131
  %v135 = vpack.c.bf16 %v132, %v132
  %v139 = vunpack.c.l.b16 %v133
  %v140 = vunpack.c.l.b16 %v134
  %v141 = vunpack.c.l.b16 %v135
  %v142 = vpack.c.b16 %v140, %v139
  %v143 = vpack.c.b16 %v141, %v141
  %144 = vrot.lane.b32.xlu0 %v142, 126
  %v145 = vpop.permute.xlu0 %144
  %146 = vrot.lane.b32.xlu0 %v143, 126
  %v147 = vpop.permute.xlu0 %146
  %v148 = vrot.slane %v145, 4
  %v149 = vrot.slane %v147, 4
  %v150 = vsel %vm113, %v148, %v149
  %vm151 = vcmask 1031168
  %v152 = vsel %vm151, %v145, %v150
  %154 = vst [vmem:[#allocation2 + $0x8] sm:$0x33] %v152
  %157 = vrot.lane.b32.xlu0 %v58, 16
  %v158 = vpop.permute.xlu0 %157
  %159 = vrot.lane.b32.xlu0 %v59, 16
  %v160 = vpop.permute.xlu0 %159
  %vm161 = vcmask 130048
  %v162 = vsel %vm161, %v158, %v160
  %v166 = vmul.f32 %v81, %v158
  %v167 = vmul.f32 %v77, %v162
  %v168 = vmul.f32 %v82, %v160
  %v169 = vpack.c.bf16 %v166, %v166
  %v170 = vpack.c.bf16 %v167, %v167
  %v171 = vpack.c.bf16 %v168, %v168
  %v175 = vunpack.c.l.b16 %v169
  %v176 = vunpack.c.l.b16 %v170
  %v177 = vunpack.c.l.b16 %v171
  %v178 = vpack.c.b16 %v176, %v175
  %v179 = vpack.c.b16 %v177, %v177
  %v180 = vrot.slane %v178, 6
  %v181 = vrot.slane %v179, 6
  %182 = vrot.lane.b32.xlu0 %v180, 112
  %v183 = vpop.permute.xlu0 %182
  %184 = vrot.lane.b32.xlu0 %v181, 112
  %v185 = vpop.permute.xlu0 %184
  %v186 = vrot.slane %v183, 4
  %v187 = vrot.slane %v185, 4
  %v188 = vsel %vm113, %v186, %v187
  %vm189 = vcmask 916480
  %v190 = vsel %vm189, %v183, %v188
  %192 = vst [vmem:[#allocation2 + $0x8] sm:$0xcc] %v190
  %193 = vrot.lane.b32.xlu0 %v103, 111
  %v194 = vpop.permute.xlu0 %193
  %195 = vrot.lane.b32.xlu0 %v104, 111
  %v196 = vpop.permute.xlu0 %195
  %v197 = vrot.slane %v194, 4
  %v198 = vrot.slane %v196, 4
  %v199 = vsel %vm113, %v197, %v198
  %vm200 = vcmask 908288
  %v201 = vsel %vm200, %v194, %v199
  %203 = vst [vmem:[#allocation2 + $0x10] sm:$0x33] %v201
  %204 = vrot.lane.b32.xlu0 %v64, 18
  %v205 = vpop.permute.xlu0 %204
  %206 = vrot.lane.b32.xlu0 %v65, 18
  %v207 = vpop.permute.xlu0 %206
  %vm208 = vcmask 146432
  %v209 = vsel %vm208, %v205, %v207
  %v213 = vmul.f32 %v81, %v205
  %v214 = vmul.f32 %v77, %v209
  %v215 = vmul.f32 %v82, %v207
  %v216 = vpack.c.bf16 %v213, %v213
  %v217 = vpack.c.bf16 %v214, %v214
  %v218 = vpack.c.bf16 %v215, %v215
  %v222 = vunpack.c.l.b16 %v216
  %v223 = vunpack.c.l.b16 %v217
  %v224 = vunpack.c.l.b16 %v218
  %v225 = vpack.c.b16 %v223, %v222
  %v226 = vpack.c.b16 %v224, %v224
  %v227 = vrot.slane %v225, 6
  %v228 = vrot.slane %v226, 6
  %229 = vrot.lane.b32.xlu0 %v227, 110
  %v230 = vpop.permute.xlu0 %229
  %231 = vrot.lane.b32.xlu0 %v228, 110
  %v232 = vpop.permute.xlu0 %231
  %v233 = vrot.slane %v230, 4
  %v234 = vrot.slane %v232, 4
  %v235 = vsel %vm113, %v233, %v234
  %vm236 = vcmask 900096
  %v237 = vsel %vm236, %v230, %v235
  %239 = vst [vmem:[#allocation2 + $0x10] sm:$0xcc] %v237
  %240 = vrot.lane.b32.xlu0 %v58, 32
  %v241 = vpop.permute.xlu0 %240
  %242 = vrot.lane.b32.xlu0 %v59, 32
  %v243 = vpop.permute.xlu0 %242
  %vm244 = vcmask 261120
  %v245 = vsel %vm244, %v241, %v243
  %v249 = vmul.f32 %v81, %v241
  %v250 = vmul.f32 %v77, %v245
  %v251 = vmul.f32 %v82, %v243
  %v252 = vpack.c.bf16 %v249, %v249
  %v253 = vpack.c.bf16 %v250, %v250
  %v254 = vpack.c.bf16 %v251, %v251
  %v258 = vunpack.c.l.b16 %v252
  %v259 = vunpack.c.l.b16 %v253
  %v260 = vunpack.c.l.b16 %v254
  %v261 = vpack.c.b16 %v259, %v258
  %v262 = vpack.c.b16 %v260, %v260
  %263 = vrot.lane.b32.xlu0 %v261, 96
  %v264 = vpop.permute.xlu0 %263
  %265 = vrot.lane.b32.xlu0 %v262, 96
  %v266 = vpop.permute.xlu0 %265
  %v267 = vrot.slane %v264, 4
  %v268 = vrot.slane %v266, 4
  %v269 = vsel %vm113, %v267, %v268
  %vm270 = vcmask 785408
  %v271 = vsel %vm270, %v264, %v269
  %273 = vst [vmem:[#allocation2 + $0x18] sm:$0x33] %v271
  %274 = vrot.lane.b32.xlu0 %v105, 95
  %v275 = vpop.permute.xlu0 %274
  %276 = vrot.lane.b32.xlu0 %v106, 95
  %v277 = vpop.permute.xlu0 %276
  %v278 = vrot.slane %v275, 4
  %v279 = vrot.slane %v277, 4
  %v280 = vsel %vm113, %v278, %v279
  %vm281 = vcmask 777216
  %v282 = vsel %vm281, %v275, %v280
  %284 = vst [vmem:[#allocation2 + $0x18] sm:$0xcc] %v282
  %285 = vrot.lane.b32.xlu0 %v64, 34
  %v286 = vpop.permute.xlu0 %285
  %287 = vrot.lane.b32.xlu0 %v65, 34
  %v288 = vpop.permute.xlu0 %287
  %vm289 = vcmask 277504
  %v290 = vsel %vm289, %v286, %v288
  %v294 = vmul.f32 %v81, %v286
  %v295 = vmul.f32 %v77, %v290
  %v296 = vmul.f32 %v82, %v288
  %v297 = vpack.c.bf16 %v294, %v294
  %v298 = vpack.c.bf16 %v295, %v295
  %v299 = vpack.c.bf16 %v296, %v296
  %v303 = vunpack.c.l.b16 %v297
  %v304 = vunpack.c.l.b16 %v298
  %v305 = vunpack.c.l.b16 %v299
  %v306 = vpack.c.b16 %v304, %v303
  %v307 = vpack.c.b16 %v305, %v305
  %308 = vrot.lane.b32.xlu0 %v306, 94
  %v309 = vpop.permute.xlu0 %308
  %310 = vrot.lane.b32.xlu0 %v307, 94
  %v311 = vpop.permute.xlu0 %310
  %v312 = vrot.slane %v309, 4
  %v313 = vrot.slane %v311, 4
  %v314 = vsel %vm113, %v312, %v313
  %vm315 = vcmask 769024
  %v316 = vsel %vm315, %v309, %v314
  %318 = vst [vmem:[#allocation2 + $0x20] sm:$0x33] %v316
  %v319 = vld [vmem:[#allocation2] sm:$0xff]
  %v320 = vld [vmem:[#allocation2 + $0x8] sm:$0xff]
  %v321 = vld [vmem:[#allocation2 + $0x10] sm:$0xff]
  %v322 = vld [vmem:[#allocation2 + $0x18] sm:$0xff]
  %v323 = vld [vmem:[#allocation2 + $0x20] sm:$0x33]
  %v329 = vunpack.c.l.b16 %v319
  %v330 = vunpack.c.h.b16 %v319
  %v331 = vunpack.c.l.b16 %v320
  %v332 = vunpack.c.h.b16 %v320
  %v333 = vunpack.c.l.b16 %v321
  %v334 = vunpack.c.h.b16 %v321
  %v335 = vunpack.c.l.b16 %v322
  %v336 = vunpack.c.h.b16 %v322
  %v337 = vunpack.c.l.b16 %v323
  %v338 = vunpack.c.h.b16 %v323
  %v339 = vpack.c.b16 %v331, %v329
  %v340 = vpack.c.b16 %v332, %v330
  %v341 = vpack.c.b16 %v335, %v333
  %v342 = vpack.c.b16 %v336, %v334
  %v343 = vpack.c.b16 %v337, %v337
  %v344 = vpack.c.b16 %v338, %v338
  %vm349 = vcmask 293888
  %v351 = vsel %vm349, %v69, 0
  %vm353 = vcmask 1041408
  %v355 = vsel %vm353, %v343, 0
  %v358 = vsel %vm353, %v344, 0
  %360 = vmatprep.subr.bf16.mxu0 0
  %361 = vmatpush1.bf16.msra.mxu0 0
  %362 = vmatprep.subr.bf16.mxu0 0
  %363 = vmatpush1.bf16.msra.mxu0 0
  %364 = vmatprep.subr.bf16.mxu0 0
  %365 = vmatpush1.bf16.msra.mxu0 0
  %366 = vmatprep.subr.bf16.mxu0 0
  %367 = vmatpush1.bf16.msra.mxu0 0
  %368 = vmatprep.subr.bf16.mxu0 0
  %369 = vmatpush1.bf16.msra.mxu0 0
  %370 = vmatprep.subr.bf16.mxu0 %v358
  %371 = vmatpush1.bf16.msra.mxu0 %v355
  %372 = vmatprep.subr.bf16.mxu0 %v342
  %373 = vmatpush1.bf16.msra.mxu0 %v341
  %374 = vmatprep.subr.bf16.mxu0 %v340
  %375 = vmatpush1.bf16.msra.mxu0 %v339
  %376 = vmatprep.subr.bf16.mxu0 0
  %377 = vmatpush2.bf16.msra.mxu0 0
  %378 = vmatprep.subr.bf16.mxu0 0
  %379 = vmatpush2.bf16.msra.mxu0 0
  %380 = vmatprep.subr.bf16.mxu0 0
  %381 = vmatpush2.bf16.msra.mxu0 0
  %382 = vmatprep.subr.bf16.mxu0 0
  %383 = vmatpush2.bf16.msra.mxu0 0
  %384 = vmatprep.subr.bf16.mxu0 0
  %385 = vmatpush2.bf16.msra.mxu0 0
  %386 = vmatprep.subr.bf16.mxu0 0
  %387 = vmatpush2.bf16.msra.mxu0 0
  %388 = vmatprep.subr.bf16.mxu0 0
  %389 = vmatpush2.bf16.msra.mxu0 0
  %390 = vmatprep.subr.bf16.mxu0 0
  %391 = vmatpush2.bf16.msra.mxu0 0
  %392 = vmatprep.mubr.bf16.mxu0 0
  %393 = vmatmul.mubr.bf16.gmra.mxu0 %v351
  %v394 = vpop.f32.mrf.mxu0
  %v395 = vadd.f32 0.0, %v394
  %v396 = vpop.f32.mrf.mxu0
  %v397 = vadd.f32 0.0, %v396
  %v398 = vpop.f32.mrf.mxu0
  %v399 = vpop.f32.mrf.mxu0
  %400 = vdwg.mxu0
  %v402 = vcombine.high %v68, %v68
  %403 = vrot.lane.b32.xlu0 %v68, 17
  %v404 = vpop.permute.xlu0 %403
  %405 = vrot.lane.b32.xlu0 %v402, 17
  %v406 = vpop.permute.xlu0 %405
  %v407 = vsel %vm76, %v404, %v406
  %v411 = vsel %vm76, 0.0, %v404
  %v412 = vsel %vm76, %v406, 0.0
  %v413 = vmul.f32 %v411, %v58
  %v414 = vmul.f32 %v407, %v59
  %v415 = vpack.c.bf16 %v413, %v413
  %v416 = vpack.c.bf16 %v414, %v414
  %v419 = vunpack.c.l.b16 %v415
  %v420 = vunpack.c.l.b16 %v416
  %v421 = vpack.c.b16 %v420, %v419
  %423 = vst [vmem:[#allocation2] sm:$0x33] %v421
  %v424 = vpack.c.bf16 %v411, %v411
  %v425 = vpack.c.bf16 %v407, %v407
  %v426 = vpack.c.bf16 %v412, %v412
  %v430 = vunpack.c.l.b16 %v424
  %v431 = vunpack.c.l.b16 %v425
  %v432 = vunpack.c.l.b16 %v426
  %v433 = vpack.c.b16 %v431, %v430
  %v434 = vpack.c.b16 %v432, %v432
  %v435 = vrot.slane %v433, 6
  %v436 = vrot.slane %v434, 6
  %437 = vrot.lane.b32.xlu0 %v435, 127
  %v438 = vpop.permute.xlu0 %437
  %439 = vrot.lane.b32.xlu0 %v436, 127
  %v440 = vpop.permute.xlu0 %439
  %v441 = vrot.slane %v438, 4
  %v442 = vrot.slane %v440, 4
  %v443 = vsel %vm113, %v441, %v442
  %v444 = vsel %vm115, %v438, %v443
  %446 = vst [vmem:[#allocation2] sm:$0xcc] %v444
  %v447 = vmul.f32 %v411, %v122
  %v448 = vmul.f32 %v407, %v126
  %v449 = vmul.f32 %v412, %v124
  %v450 = vpack.c.bf16 %v447, %v447
  %v451 = vpack.c.bf16 %v448, %v448
  %v452 = vpack.c.bf16 %v449, %v449
  %v456 = vunpack.c.l.b16 %v450
  %v457 = vunpack.c.l.b16 %v451
  %v458 = vunpack.c.l.b16 %v452
  %v459 = vpack.c.b16 %v457, %v456
  %v460 = vpack.c.b16 %v458, %v458
  %461 = vrot.lane.b32.xlu0 %v459, 126
  %v462 = vpop.permute.xlu0 %461
  %463 = vrot.lane.b32.xlu0 %v460, 126
  %v464 = vpop.permute.xlu0 %463
  %v465 = vrot.slane %v462, 4
  %v466 = vrot.slane %v464, 4
  %v467 = vsel %vm113, %v465, %v466
  %v468 = vsel %vm151, %v462, %v467
  %470 = vst [vmem:[#allocation2 + $0x8] sm:$0x33] %v468
  %v471 = vmul.f32 %v411, %v158
  %v472 = vmul.f32 %v407, %v162
  %v473 = vmul.f32 %v412, %v160
  %v474 = vpack.c.bf16 %v471, %v471
  %v475 = vpack.c.bf16 %v472, %v472
  %v476 = vpack.c.bf16 %v473, %v473
  %v480 = vunpack.c.l.b16 %v474
  %v481 = vunpack.c.l.b16 %v475
  %v482 = vunpack.c.l.b16 %v476
  %v483 = vpack.c.b16 %v481, %v480
  %v484 = vpack.c.b16 %v482, %v482
  %v485 = vrot.slane %v483, 6
  %v486 = vrot.slane %v484, 6
  %487 = vrot.lane.b32.xlu0 %v485, 112
  %v488 = vpop.permute.xlu0 %487
  %489 = vrot.lane.b32.xlu0 %v486, 112
  %v490 = vpop.permute.xlu0 %489
  %v491 = vrot.slane %v488, 4
  %v492 = vrot.slane %v490, 4
  %v493 = vsel %vm113, %v491, %v492
  %v494 = vsel %vm189, %v488, %v493
  %496 = vst [vmem:[#allocation2 + $0x8] sm:$0xcc] %v494
  %497 = vrot.lane.b32.xlu0 %v433, 111
  %v498 = vpop.permute.xlu0 %497
  %499 = vrot.lane.b32.xlu0 %v434, 111
  %v500 = vpop.permute.xlu0 %499
  %v501 = vrot.slane %v498, 4
  %v502 = vrot.slane %v500, 4
  %v503 = vsel %vm113, %v501, %v502
  %v504 = vsel %vm200, %v498, %v503
  %506 = vst [vmem:[#allocation2 + $0x10] sm:$0x33] %v504
  %v507 = vmul.f32 %v411, %v205
  %v508 = vmul.f32 %v407, %v209
  %v509 = vmul.f32 %v412, %v207
  %v510 = vpack.c.bf16 %v507, %v507
  %v511 = vpack.c.bf16 %v508, %v508
  %v512 = vpack.c.bf16 %v509, %v509
  %v516 = vunpack.c.l.b16 %v510
  %v517 = vunpack.c.l.b16 %v511
  %v518 = vunpack.c.l.b16 %v512
  %v519 = vpack.c.b16 %v517, %v516
  %v520 = vpack.c.b16 %v518, %v518
  %v521 = vrot.slane %v519, 6
  %v522 = vrot.slane %v520, 6
  %523 = vrot.lane.b32.xlu0 %v521, 110
  %v524 = vpop.permute.xlu0 %523
  %525 = vrot.lane.b32.xlu0 %v522, 110
  %v526 = vpop.permute.xlu0 %525
  %v527 = vrot.slane %v524, 4
  %v528 = vrot.slane %v526, 4
  %v529 = vsel %vm113, %v527, %v528
  %v530 = vsel %vm236, %v524, %v529
  %532 = vst [vmem:[#allocation2 + $0x10] sm:$0xcc] %v530
  %v533 = vmul.f32 %v411, %v241
  %v534 = vmul.f32 %v407, %v245
  %v535 = vmul.f32 %v412, %v243
  %v536 = vpack.c.bf16 %v533, %v533
  %v537 = vpack.c.bf16 %v534, %v534
  %v538 = vpack.c.bf16 %v535, %v535
  %v542 = vunpack.c.l.b16 %v536
  %v543 = vunpack.c.l.b16 %v537
  %v544 = vunpack.c.l.b16 %v538
  %v545 = vpack.c.b16 %v543, %v542
  %v546 = vpack.c.b16 %v544, %v544
  %547 = vrot.lane.b32.xlu0 %v545, 96
  %v548 = vpop.permute.xlu0 %547
  %549 = vrot.lane.b32.xlu0 %v546, 96
  %v550 = vpop.permute.xlu0 %549
  %v551 = vrot.slane %v548, 4
  %v552 = vrot.slane %v550, 4
  %v553 = vsel %vm113, %v551, %v552
  %v554 = vsel %vm270, %v548, %v553
  %556 = vst [vmem:[#allocation2 + $0x18] sm:$0x33] %v554
  %557 = vrot.lane.b32.xlu0 %v435, 95
  %v558 = vpop.permute.xlu0 %557
  %559 = vrot.lane.b32.xlu0 %v436, 95
  %v560 = vpop.permute.xlu0 %559
  %v561 = vrot.slane %v558, 4
  %v562 = vrot.slane %v560, 4
  %v563 = vsel %vm113, %v561, %v562
  %v564 = vsel %vm281, %v558, %v563
  %566 = vst [vmem:[#allocation2 + $0x18] sm:$0xcc] %v564
  %v567 = vmul.f32 %v411, %v286
  %v568 = vmul.f32 %v407, %v290
  %v569 = vmul.f32 %v412, %v288
  %v570 = vpack.c.bf16 %v567, %v567
  %v571 = vpack.c.bf16 %v568, %v568
  %v572 = vpack.c.bf16 %v569, %v569
  %v576 = vunpack.c.l.b16 %v570
  %v577 = vunpack.c.l.b16 %v571
  %v578 = vunpack.c.l.b16 %v572
  %v579 = vpack.c.b16 %v577, %v576
  %v580 = vpack.c.b16 %v578, %v578
  %581 = vrot.lane.b32.xlu0 %v579, 94
  %v582 = vpop.permute.xlu0 %581
  %583 = vrot.lane.b32.xlu0 %v580, 94
  %v584 = vpop.permute.xlu0 %583
  %v585 = vrot.slane %v582, 4
  %v586 = vrot.slane %v584, 4
  %v587 = vsel %vm113, %v585, %v586
  %v588 = vsel %vm315, %v582, %v587
  %590 = vst [vmem:[#allocation2 + $0x20] sm:$0x33] %v588
  %v591 = vld [vmem:[#allocation2] sm:$0xff]
  %v592 = vld [vmem:[#allocation2 + $0x8] sm:$0xff]
  %v593 = vld [vmem:[#allocation2 + $0x10] sm:$0xff]
  %v594 = vld [vmem:[#allocation2 + $0x18] sm:$0xff]
  %v595 = vld [vmem:[#allocation2 + $0x20] sm:$0x33]
  %v601 = vunpack.c.l.b16 %v591
  %v602 = vunpack.c.h.b16 %v591
  %v603 = vunpack.c.l.b16 %v592
  %v604 = vunpack.c.h.b16 %v592
  %v605 = vunpack.c.l.b16 %v593
  %v606 = vunpack.c.h.b16 %v593
  %v607 = vunpack.c.l.b16 %v594
  %v608 = vunpack.c.h.b16 %v594
  %v609 = vunpack.c.l.b16 %v595
  %v610 = vunpack.c.h.b16 %v595
  %v611 = vpack.c.b16 %v603, %v601
  %v612 = vpack.c.b16 %v604, %v602
  %v613 = vpack.c.b16 %v607, %v605
  %v614 = vpack.c.b16 %v608, %v606
  %v615 = vpack.c.b16 %v609, %v609
  %v616 = vpack.c.b16 %v610, %v610
  %v622 = vsel %vm353, %v615, 0
  %v625 = vsel %vm353, %v616, 0
  %627 = vmatprep.subr.bf16.mxu0 0
  %628 = vmatpush1.bf16.msra.mxu0 0
  %629 = vmatprep.subr.bf16.mxu0 0
  %630 = vmatpush1.bf16.msra.mxu0 0
  %631 = vmatprep.subr.bf16.mxu0 0
  %632 = vmatpush1.bf16.msra.mxu0 0
  %633 = vmatprep.subr.bf16.mxu0 0
  %634 = vmatpush1.bf16.msra.mxu0 0
  %635 = vmatprep.subr.bf16.mxu0 0
  %636 = vmatpush1.bf16.msra.mxu0 0
  %637 = vmatprep.subr.bf16.mxu0 %v625
  %638 = vmatpush1.bf16.msra.mxu0 %v622
  %639 = vmatprep.subr.bf16.mxu0 %v614
  %640 = vmatpush1.bf16.msra.mxu0 %v613
  %641 = vmatprep.subr.bf16.mxu0 %v612
  %642 = vmatpush1.bf16.msra.mxu0 %v611
  %643 = vmatprep.subr.bf16.mxu0 0
  %644 = vmatpush2.bf16.msra.mxu0 0
  %645 = vmatprep.subr.bf16.mxu0 0
  %646 = vmatpush2.bf16.msra.mxu0 0
  %647 = vmatprep.subr.bf16.mxu0 0
  %648 = vmatpush2.bf16.msra.mxu0 0
  %649 = vmatprep.subr.bf16.mxu0 0
  %650 = vmatpush2.bf16.msra.mxu0 0
  %651 = vmatprep.subr.bf16.mxu0 0
  %652 = vmatpush2.bf16.msra.mxu0 0
  %653 = vmatprep.subr.bf16.mxu0 0
  %654 = vmatpush2.bf16.msra.mxu0 0
  %655 = vmatprep.subr.bf16.mxu0 0
  %656 = vmatpush2.bf16.msra.mxu0 0
  %657 = vmatprep.subr.bf16.mxu0 0
  %658 = vmatpush2.bf16.msra.mxu0 0
  %659 = vmatprep.mubr.bf16.mxu0 0
  %660 = vmatmul.mubr.bf16.gmra.mxu0 %v351
  %v661 = vpop.f32.mrf.mxu0
  %v662 = vadd.f32 0.0, %v661
  %v663 = vpop.f32.mrf.mxu0
  %v664 = vadd.f32 0.0, %v663
  %v665 = vpop.f32.mrf.mxu0
  %v666 = vpop.f32.mrf.mxu0
  %667 = vdwg.mxu0
  %v668 = vmul.f32 %v395, %v395
  %v669 = vmul.f32 %v397, %v397
  %670 = vmatprep.subr.mxu0 0.0
  %671 = vmatpush1.msra.mxu0 1.0
  %672 = vmatprep.subr.mxu0 0.0
  %673 = vmatpush1.msra.mxu0 1.0
  %674 = vmatprep.subr.mxu0 0.0
  %675 = vmatpush1.msra.mxu0 1.0
  %676 = vmatprep.subr.mxu0 0.0
  %677 = vmatpush1.msra.mxu0 1.0
  %678 = vmatprep.subr.mxu0 0.0
  %679 = vmatpush1.msra.mxu0 1.0
  %680 = vmatprep.subr.mxu0 0.0
  %681 = vmatpush1.msra.mxu0 1.0
  %682 = vmatprep.subr.mxu0 0.0
  %683 = vmatpush1.msra.mxu0 1.0
  %684 = vmatprep.subr.mxu0 0.0
  %685 = vmatpush1.msra.mxu0 1.0
  %686 = vmatprep.subr.mxu0 0.0
  %687 = vmatpush1.msra.mxu0 1.0
  %688 = vmatprep.subr.mxu0 0.0
  %689 = vmatpush1.msra.mxu0 1.0
  %690 = vmatprep.subr.mxu0 0.0
  %691 = vmatpush1.msra.mxu0 1.0
  %692 = vmatprep.subr.mxu0 0.0
  %693 = vmatpush1.msra.mxu0 1.0
  %694 = vmatprep.subr.mxu0 0.0
  %695 = vmatpush1.msra.mxu0 1.0
  %696 = vmatprep.subr.mxu0 0.0
  %697 = vmatpush1.msra.mxu0 1.0
  %698 = vmatprep.subr.mxu0 0.0
  %699 = vmatpush1.msra.mxu0 1.0
  %700 = vmatprep.subr.mxu0 0.0
  %701 = vmatpush1.msra.mxu0 1.0
  %702 = vmatprep.subr.mxu0 0.0
  %703 = vmatpush2.msra.mxu0 1.0
  %704 = vmatprep.subr.mxu0 0.0
  %705 = vmatpush2.msra.mxu0 1.0
  %706 = vmatprep.subr.mxu0 0.0
  %707 = vmatpush2.msra.mxu0 1.0
  %708 = vmatprep.subr.mxu0 0.0
  %709 = vmatpush2.msra.mxu0 1.0
  %710 = vmatprep.subr.mxu0 0.0
  %711 = vmatpush2.msra.mxu0 1.0
  %712 = vmatprep.subr.mxu0 0.0
  %713 = vmatpush2.msra.mxu0 1.0
  %714 = vmatprep.subr.mxu0 0.0
  %715 = vmatpush2.msra.mxu0 1.0
  %716 = vmatprep.subr.mxu0 0.0
  %717 = vmatpush2.msra.mxu0 1.0
  %718 = vmatprep.subr.mxu0 0.0
  %719 = vmatpush2.msra.mxu0 1.0
  %720 = vmatprep.subr.mxu0 0.0
  %721 = vmatpush2.msra.mxu0 1.0
  %722 = vmatprep.subr.mxu0 0.0
  %723 = vmatpush2.msra.mxu0 1.0
  %724 = vmatprep.subr.mxu0 0.0
  %725 = vmatpush2.msra.mxu0 1.0
  %726 = vmatprep.subr.mxu0 0.0
  %727 = vmatpush2.msra.mxu0 1.0
  %728 = vmatprep.subr.mxu0 0.0
  %729 = vmatpush2.msra.mxu0 1.0
  %730 = vmatprep.subr.mxu0 0.0
  %731 = vmatpush2.msra.mxu0 1.0
  %732 = vmatprep.subr.mxu0 0.0
  %733 = vmatpush2.msra.mxu0 1.0
  %734 = vmatprep.mubr.f32.mxu0 %v664
  %735 = vmatmul.mubr.f32.gmra.mxu0 %v662
  %v736 = vpop.f32.mrf.mxu0
  %v737 = vadd.f32 0.0, %v736
  %v738 = vpop.f32.mrf.mxu0
  %739 = vdwg.mxu0
  %740 = vmatprep.subr.mxu0 0.0
  %741 = vmatpush1.msra.mxu0 1.0
  %742 = vmatprep.subr.mxu0 0.0
  %743 = vmatpush1.msra.mxu0 1.0
  %744 = vmatprep.subr.mxu0 0.0
  %745 = vmatpush1.msra.mxu0 1.0
  %746 = vmatprep.subr.mxu0 0.0
  %747 = vmatpush1.msra.mxu0 1.0
  %748 = vmatprep.subr.mxu0 0.0
  %749 = vmatpush1.msra.mxu0 1.0
  %750 = vmatprep.subr.mxu0 0.0
  %751 = vmatpush1.msra.mxu0 1.0
  %752 = vmatprep.subr.mxu0 0.0
  %753 = vmatpush1.msra.mxu0 1.0
  %754 = vmatprep.subr.mxu0 0.0
  %755 = vmatpush1.msra.mxu0 1.0
  %756 = vmatprep.subr.mxu0 0.0
  %757 = vmatpush1.msra.mxu0 1.0
  %758 = vmatprep.subr.mxu0 0.0
  %759 = vmatpush1.msra.mxu0 1.0
  %760 = vmatprep.subr.mxu0 0.0
  %761 = vmatpush1.msra.mxu0 1.0
  %762 = vmatprep.subr.mxu0 0.0
  %763 = vmatpush1.msra.mxu0 1.0
  %764 = vmatprep.subr.mxu0 0.0
  %765 = vmatpush1.msra.mxu0 1.0
  %766 = vmatprep.subr.mxu0 0.0
  %767 = vmatpush1.msra.mxu0 1.0
  %768 = vmatprep.subr.mxu0 0.0
  %769 = vmatpush1.msra.mxu0 1.0
  %770 = vmatprep.subr.mxu0 0.0
  %771 = vmatpush1.msra.mxu0 1.0
  %772 = vmatprep.subr.mxu0 0.0
  %773 = vmatpush2.msra.mxu0 1.0
  %774 = vmatprep.subr.mxu0 0.0
  %775 = vmatpush2.msra.mxu0 1.0
  %776 = vmatprep.subr.mxu0 0.0
  %777 = vmatpush2.msra.mxu0 1.0
  %778 = vmatprep.subr.mxu0 0.0
  %779 = vmatpush2.msra.mxu0 1.0
  %780 = vmatprep.subr.mxu0 0.0
  %781 = vmatpush2.msra.mxu0 1.0
  %782 = vmatprep.subr.mxu0 0.0
  %783 = vmatpush2.msra.mxu0 1.0
  %784 = vmatprep.subr.mxu0 0.0
  %785 = vmatpush2.msra.mxu0 1.0
  %786 = vmatprep.subr.mxu0 0.0
  %787 = vmatpush2.msra.mxu0 1.0
  %788 = vmatprep.subr.mxu0 0.0
  %789 = vmatpush2.msra.mxu0 1.0
  %790 = vmatprep.subr.mxu0 0.0
  %791 = vmatpush2.msra.mxu0 1.0
  %792 = vmatprep.subr.mxu0 0.0
  %793 = vmatpush2.msra.mxu0 1.0
  %794 = vmatprep.subr.mxu0 0.0
  %795 = vmatpush2.msra.mxu0 1.0
  %796 = vmatprep.subr.mxu0 0.0
  %797 = vmatpush2.msra.mxu0 1.0
  %798 = vmatprep.subr.mxu0 0.0
  %799 = vmatpush2.msra.mxu0 1.0
  %800 = vmatprep.subr.mxu0 0.0
  %801 = vmatpush2.msra.mxu0 1.0
  %802 = vmatprep.subr.mxu0 0.0
  %803 = vmatpush2.msra.mxu0 1.0
  %804 = vmatprep.mubr.f32.mxu0 %v397
  %805 = vmatmul.mubr.f32.gmra.mxu0 %v395
  %v806 = vpop.f32.mrf.mxu0
  %v807 = vadd.f32 %v737, %v806
  %v808 = vpop.f32.mrf.mxu0
  %809 = vdwg.mxu0
  %v810 = vmul.f32 %v662, %v662
  %v811 = vmul.f32 %v664, %v664
  %812 = vmatprep.subr.mxu0 0.0
  %813 = vmatpush1.msra.mxu0 1.0
  %814 = vmatprep.subr.mxu0 0.0
  %815 = vmatpush1.msra.mxu0 1.0
  %816 = vmatprep.subr.mxu0 0.0
  %817 = vmatpush1.msra.mxu0 1.0
  %818 = vmatprep.subr.mxu0 0.0
  %819 = vmatpush1.msra.mxu0 1.0
  %820 = vmatprep.subr.mxu0 0.0
  %821 = vmatpush1.msra.mxu0 1.0
  %822 = vmatprep.subr.mxu0 0.0
  %823 = vmatpush1.msra.mxu0 1.0
  %824 = vmatprep.subr.mxu0 0.0
  %825 = vmatpush1.msra.mxu0 1.0
  %826 = vmatprep.subr.mxu0 0.0
  %827 = vmatpush1.msra.mxu0 1.0
  %828 = vmatprep.subr.mxu0 0.0
  %829 = vmatpush1.msra.mxu0 1.0
  %830 = vmatprep.subr.mxu0 0.0
  %831 = vmatpush1.msra.mxu0 1.0
  %832 = vmatprep.subr.mxu0 0.0
  %833 = vmatpush1.msra.mxu0 1.0
  %834 = vmatprep.subr.mxu0 0.0
  %835 = vmatpush1.msra.mxu0 1.0
  %836 = vmatprep.subr.mxu0 0.0
  %837 = vmatpush1.msra.mxu0 1.0
  %838 = vmatprep.subr.mxu0 0.0
  %839 = vmatpush1.msra.mxu0 1.0
  %840 = vmatprep.subr.mxu0 0.0
  %841 = vmatpush1.msra.mxu0 1.0
  %842 = vmatprep.subr.mxu0 0.0
  %843 = vmatpush1.msra.mxu0 1.0
  %844 = vmatprep.subr.mxu0 0.0
  %845 = vmatpush2.msra.mxu0 1.0
  %846 = vmatprep.subr.mxu0 0.0
  %847 = vmatpush2.msra.mxu0 1.0
  %848 = vmatprep.subr.mxu0 0.0
  %849 = vmatpush2.msra.mxu0 1.0
  %850 = vmatprep.subr.mxu0 0.0
  %851 = vmatpush2.msra.mxu0 1.0
  %852 = vmatprep.subr.mxu0 0.0
  %853 = vmatpush2.msra.mxu0 1.0
  %854 = vmatprep.subr.mxu0 0.0
  %855 = vmatpush2.msra.mxu0 1.0
  %856 = vmatprep.subr.mxu0 0.0
  %857 = vmatpush2.msra.mxu0 1.0
  %858 = vmatprep.subr.mxu0 0.0
  %859 = vmatpush2.msra.mxu0 1.0
  %860 = vmatprep.subr.mxu0 0.0
  %861 = vmatpush2.msra.mxu0 1.0
  %862 = vmatprep.subr.mxu0 0.0
  %863 = vmatpush2.msra.mxu0 1.0
  %864 = vmatprep.subr.mxu0 0.0
  %865 = vmatpush2.msra.mxu0 1.0
  %866 = vmatprep.subr.mxu0 0.0
  %867 = vmatpush2.msra.mxu0 1.0
  %868 = vmatprep.subr.mxu0 0.0
  %869 = vmatpush2.msra.mxu0 1.0
  %870 = vmatprep.subr.mxu0 0.0
  %871 = vmatpush2.msra.mxu0 1.0
  %872 = vmatprep.subr.mxu0 0.0
  %873 = vmatpush2.msra.mxu0 1.0
  %874 = vmatprep.subr.mxu0 0.0
  %875 = vmatpush2.msra.mxu0 1.0
  %876 = vmatprep.mubr.f32.mxu0 %v811
  %877 = vmatmul.mubr.f32.gmra.mxu0 %v810
  %v878 = vpop.f32.mrf.mxu0
  %v879 = vadd.f32 0.0, %v878
  %v880 = vpop.f32.mrf.mxu0
  %881 = vdwg.mxu0
  %882 = vmatprep.subr.mxu0 0.0
  %883 = vmatpush1.msra.mxu0 1.0
  %884 = vmatprep.subr.mxu0 0.0
  %885 = vmatpush1.msra.mxu0 1.0
  %886 = vmatprep.subr.mxu0 0.0
  %887 = vmatpush1.msra.mxu0 1.0
  %888 = vmatprep.subr.mxu0 0.0
  %889 = vmatpush1.msra.mxu0 1.0
  %890 = vmatprep.subr.mxu0 0.0
  %891 = vmatpush1.msra.mxu0 1.0
  %892 = vmatprep.subr.mxu0 0.0
  %893 = vmatpush1.msra.mxu0 1.0
  %894 = vmatprep.subr.mxu0 0.0
  %895 = vmatpush1.msra.mxu0 1.0
  %896 = vmatprep.subr.mxu0 0.0
  %897 = vmatpush1.msra.mxu0 1.0
  %898 = vmatprep.subr.mxu0 0.0
  %899 = vmatpush1.msra.mxu0 1.0
  %900 = vmatprep.subr.mxu0 0.0
  %901 = vmatpush1.msra.mxu0 1.0
  %902 = vmatprep.subr.mxu0 0.0
  %903 = vmatpush1.msra.mxu0 1.0
  %904 = vmatprep.subr.mxu0 0.0
  %905 = vmatpush1.msra.mxu0 1.0
  %906 = vmatprep.subr.mxu0 0.0
  %907 = vmatpush1.msra.mxu0 1.0
  %908 = vmatprep.subr.mxu0 0.0
  %909 = vmatpush1.msra.mxu0 1.0
  %910 = vmatprep.subr.mxu0 0.0
  %911 = vmatpush1.msra.mxu0 1.0
  %912 = vmatprep.subr.mxu0 0.0
  %913 = vmatpush1.msra.mxu0 1.0
  %914 = vmatprep.subr.mxu0 0.0
  %915 = vmatpush2.msra.mxu0 1.0
  %916 = vmatprep.subr.mxu0 0.0
  %917 = vmatpush2.msra.mxu0 1.0
  %918 = vmatprep.subr.mxu0 0.0
  %919 = vmatpush2.msra.mxu0 1.0
  %920 = vmatprep.subr.mxu0 0.0
  %921 = vmatpush2.msra.mxu0 1.0
  %922 = vmatprep.subr.mxu0 0.0
  %923 = vmatpush2.msra.mxu0 1.0
  %924 = vmatprep.subr.mxu0 0.0
  %925 = vmatpush2.msra.mxu0 1.0
  %926 = vmatprep.subr.mxu0 0.0
  %927 = vmatpush2.msra.mxu0 1.0
  %928 = vmatprep.subr.mxu0 0.0
  %929 = vmatpush2.msra.mxu0 1.0
  %930 = vmatprep.subr.mxu0 0.0
  %931 = vmatpush2.msra.mxu0 1.0
  %932 = vmatprep.subr.mxu0 0.0
  %933 = vmatpush2.msra.mxu0 1.0
  %934 = vmatprep.subr.mxu0 0.0
  %935 = vmatpush2.msra.mxu0 1.0
  %936 = vmatprep.subr.mxu0 0.0
  %937 = vmatpush2.msra.mxu0 1.0
  %938 = vmatprep.subr.mxu0 0.0
  %939 = vmatpush2.msra.mxu0 1.0
  %940 = vmatprep.subr.mxu0 0.0
  %941 = vmatpush2.msra.mxu0 1.0
  %942 = vmatprep.subr.mxu0 0.0
  %943 = vmatpush2.msra.mxu0 1.0
  %944 = vmatprep.subr.mxu0 0.0
  %945 = vmatpush2.msra.mxu0 1.0
  %946 = vmatprep.mubr.f32.mxu0 %v669
  %947 = vmatmul.mubr.f32.gmra.mxu0 %v668
  %v948 = vpop.f32.mrf.mxu0
  %v949 = vadd.f32 %v879, %v948
  %v950 = vpop.f32.mrf.mxu0
  %951 = vdwg.mxu0
  %v952 = vmul.f32 %v807, 0.001953125
  %v953 = vmul.f32 %v949, 0.001953125
  %v954 = vmul.f32 %v952, %v952
  %v955 = vsub.f32 %v953, %v954
  %v956 = vld [vmem:[%s2] sm:$0xf]
  %v957 = vadd.f32 %v955, 1e-05
  %v958 = vrsqrt.pop %v957
  %v959 = vmul.f32 %v956, %v958
  %v960 = vld [vmem:[%s3] sm:$0xf]
  %v961 = vmul.f32 %v952, %v959
  %v962 = vsub.f32 %v960, %v961
  %964 = vset.pattern.permute.xlu0 0
  %965 = vperm.xlu0 %964, %v959
  %v966 = vpop.permute.xlu0 %965
  %v968 = vmul.f32 %v395, %v966
  %v969 = vmul.f32 %v397, %v966
  %971 = vset.pattern.permute.xlu0 0
  %972 = vperm.xlu0 %971, %v962
  %v973 = vpop.permute.xlu0 %972
  %v975 = vadd.f32 %v968, %v973
  %v976 = vadd.f32 %v969, %v973
  %v977 = vmul.f32 %v662, %v966
  %v978 = vmul.f32 %v664, %v966
  %v979 = vadd.f32 %v977, %v973
  %v980 = vadd.f32 %v978, %v973
  %v981 = vmax.f32 %v975, 0.0
  %v982 = vmax.f32 %v976, 0.0
  %v983 = vmax.f32 %v979, 0.0
  %v984 = vmax.f32 %v980, 0.0
  %v985 = vld [vmem:[%s4] sm:$0x3]
  %988 = vrot.lane.b32.xlu0 %v981, 17
  %v989 = vpop.permute.xlu0 %988
  %990 = vrot.lane.b32.xlu0 %v982, 17
  %v991 = vpop.permute.xlu0 %990
  %v992 = vsel %vm76, %v989, %v991
  %v996 = vsel %vm76, 0.0, %v989
  %v997 = vsel %vm76, %v991, 0.0
  %v998 = vmul.f32 %v996, %v58
  %v999 = vmul.f32 %v992, %v59
  %v1000 = vpack.c.bf16 %v998, %v998
  %v1001 = vpack.c.bf16 %v999, %v999
  %v1004 = vunpack.c.l.b16 %v1000
  %v1005 = vunpack.c.l.b16 %v1001
  %v1006 = vpack.c.b16 %v1005, %v1004
  %1008 = vst [vmem:[#allocation2] sm:$0x33] %v1006
  %v1009 = vpack.c.bf16 %v996, %v996
  %v1010 = vpack.c.bf16 %v992, %v992
  %v1011 = vpack.c.bf16 %v997, %v997
  %v1015 = vunpack.c.l.b16 %v1009
  %v1016 = vunpack.c.l.b16 %v1010
  %v1017 = vunpack.c.l.b16 %v1011
  %v1018 = vpack.c.b16 %v1016, %v1015
  %v1019 = vpack.c.b16 %v1017, %v1017
  %v1020 = vrot.slane %v1018, 6
  %v1021 = vrot.slane %v1019, 6
  %1022 = vrot.lane.b32.xlu0 %v1020, 127
  %v1023 = vpop.permute.xlu0 %1022
  %1024 = vrot.lane.b32.xlu0 %v1021, 127
  %v1025 = vpop.permute.xlu0 %1024
  %v1026 = vrot.slane %v1023, 4
  %v1027 = vrot.slane %v1025, 4
  %v1028 = vsel %vm113, %v1026, %v1027
  %v1029 = vsel %vm115, %v1023, %v1028
  %1031 = vst [vmem:[#allocation2] sm:$0xcc] %v1029
  %v1032 = vmul.f32 %v996, %v122
  %v1033 = vmul.f32 %v992, %v126
  %v1034 = vmul.f32 %v997, %v124
  %v1035 = vpack.c.bf16 %v1032, %v1032
  %v1036 = vpack.c.bf16 %v1033, %v1033
  %v1037 = vpack.c.bf16 %v1034, %v1034
  %v1041 = vunpack.c.l.b16 %v1035
  %v1042 = vunpack.c.l.b16 %v1036
  %v1043 = vunpack.c.l.b16 %v1037
  %v1044 = vpack.c.b16 %v1042, %v1041
  %v1045 = vpack.c.b16 %v1043, %v1043
  %1046 = vrot.lane.b32.xlu0 %v1044, 126
  %v1047 = vpop.permute.xlu0 %1046
  %1048 = vrot.lane.b32.xlu0 %v1045, 126
  %v1049 = vpop.permute.xlu0 %1048
  %v1050 = vrot.slane %v1047, 4
  %v1051 = vrot.slane %v1049, 4
  %v1052 = vsel %vm113, %v1050, %v1051
  %v1053 = vsel %vm151, %v1047, %v1052
  %1055 = vst [vmem:[#allocation2 + $0x8] sm:$0x33] %v1053
  %v1056 = vmul.f32 %v996, %v158
  %v1057 = vmul.f32 %v992, %v162
  %v1058 = vmul.f32 %v997, %v160
  %v1059 = vpack.c.bf16 %v1056, %v1056
  %v1060 = vpack.c.bf16 %v1057, %v1057
  %v1061 = vpack.c.bf16 %v1058, %v1058
  %v1065 = vunpack.c.l.b16 %v1059
  %v1066 = vunpack.c.l.b16 %v1060
  %v1067 = vunpack.c.l.b16 %v1061
  %v1068 = vpack.c.b16 %v1066, %v1065
  %v1069 = vpack.c.b16 %v1067, %v1067
  %v1070 = vrot.slane %v1068, 6
  %v1071 = vrot.slane %v1069, 6
  %1072 = vrot.lane.b32.xlu0 %v1070, 112
  %v1073 = vpop.permute.xlu0 %1072
  %1074 = vrot.lane.b32.xlu0 %v1071, 112
  %v1075 = vpop.permute.xlu0 %1074
  %v1076 = vrot.slane %v1073, 4
  %v1077 = vrot.slane %v1075, 4
  %v1078 = vsel %vm113, %v1076, %v1077
  %v1079 = vsel %vm189, %v1073, %v1078
  %1081 = vst [vmem:[#allocation2 + $0x8] sm:$0xcc] %v1079
  %1082 = vrot.lane.b32.xlu0 %v1018, 111
  %v1083 = vpop.permute.xlu0 %1082
  %1084 = vrot.lane.b32.xlu0 %v1019, 111
  %v1085 = vpop.permute.xlu0 %1084
  %v1086 = vrot.slane %v1083, 4
  %v1087 = vrot.slane %v1085, 4
  %v1088 = vsel %vm113, %v1086, %v1087
  %v1089 = vsel %vm200, %v1083, %v1088
  %1091 = vst [vmem:[#allocation2 + $0x10] sm:$0x33] %v1089
  %v1092 = vmul.f32 %v996, %v205
  %v1093 = vmul.f32 %v992, %v209
  %v1094 = vmul.f32 %v997, %v207
  %v1095 = vpack.c.bf16 %v1092, %v1092
  %v1096 = vpack.c.bf16 %v1093, %v1093
  %v1097 = vpack.c.bf16 %v1094, %v1094
  %v1101 = vunpack.c.l.b16 %v1095
  %v1102 = vunpack.c.l.b16 %v1096
  %v1103 = vunpack.c.l.b16 %v1097
  %v1104 = vpack.c.b16 %v1102, %v1101
  %v1105 = vpack.c.b16 %v1103, %v1103
  %v1106 = vrot.slane %v1104, 6
  %v1107 = vrot.slane %v1105, 6
  %1108 = vrot.lane.b32.xlu0 %v1106, 110
  %v1109 = vpop.permute.xlu0 %1108
  %1110 = vrot.lane.b32.xlu0 %v1107, 110
  %v1111 = vpop.permute.xlu0 %1110
  %v1112 = vrot.slane %v1109, 4
  %v1113 = vrot.slane %v1111, 4
  %v1114 = vsel %vm113, %v1112, %v1113
  %v1115 = vsel %vm236, %v1109, %v1114
  %1117 = vst [vmem:[#allocation2 + $0x10] sm:$0xcc] %v1115
  %v1118 = vmul.f32 %v996, %v241
  %v1119 = vmul.f32 %v992, %v245
  %v1120 = vmul.f32 %v997, %v243
  %v1121 = vpack.c.bf16 %v1118, %v1118
  %v1122 = vpack.c.bf16 %v1119, %v1119
  %v1123 = vpack.c.bf16 %v1120, %v1120
  %v1127 = vunpack.c.l.b16 %v1121
  %v1128 = vunpack.c.l.b16 %v1122
  %v1129 = vunpack.c.l.b16 %v1123
  %v1130 = vpack.c.b16 %v1128, %v1127
  %v1131 = vpack.c.b16 %v1129, %v1129
  %1132 = vrot.lane.b32.xlu0 %v1130, 96
  %v1133 = vpop.permute.xlu0 %1132
  %1134 = vrot.lane.b32.xlu0 %v1131, 96
  %v1135 = vpop.permute.xlu0 %1134
  %v1136 = vrot.slane %v1133, 4
  %v1137 = vrot.slane %v1135, 4
  %v1138 = vsel %vm113, %v1136, %v1137
  %v1139 = vsel %vm270, %v1133, %v1138
  %1141 = vst [vmem:[#allocation2 + $0x18] sm:$0x33] %v1139
  %1142 = vrot.lane.b32.xlu0 %v1020, 95
  %v1143 = vpop.permute.xlu0 %1142
  %1144 = vrot.lane.b32.xlu0 %v1021, 95
  %v1145 = vpop.permute.xlu0 %1144
  %v1146 = vrot.slane %v1143, 4
  %v1147 = vrot.slane %v1145, 4
  %v1148 = vsel %vm113, %v1146, %v1147
  %v1149 = vsel %vm281, %v1143, %v1148
  %1151 = vst [vmem:[#allocation2 + $0x18] sm:$0xcc] %v1149
  %v1152 = vmul.f32 %v996, %v286
  %v1153 = vmul.f32 %v992, %v290
  %v1154 = vmul.f32 %v997, %v288
  %v1155 = vpack.c.bf16 %v1152, %v1152
  %v1156 = vpack.c.bf16 %v1153, %v1153
  %v1157 = vpack.c.bf16 %v1154, %v1154
  %v1161 = vunpack.c.l.b16 %v1155
  %v1162 = vunpack.c.l.b16 %v1156
  %v1163 = vunpack.c.l.b16 %v1157
  %v1164 = vpack.c.b16 %v1162, %v1161
  %v1165 = vpack.c.b16 %v1163, %v1163
  %1166 = vrot.lane.b32.xlu0 %v1164, 94
  %v1167 = vpop.permute.xlu0 %1166
  %1168 = vrot.lane.b32.xlu0 %v1165, 94
  %v1169 = vpop.permute.xlu0 %1168
  %v1170 = vrot.slane %v1167, 4
  %v1171 = vrot.slane %v1169, 4
  %v1172 = vsel %vm113, %v1170, %v1171
  %v1173 = vsel %vm315, %v1167, %v1172
  %1175 = vst [vmem:[#allocation2 + $0x20] sm:$0x33] %v1173
  %v1176 = vld [vmem:[#allocation2] sm:$0xff]
  %v1177 = vld [vmem:[#allocation2 + $0x8] sm:$0xff]
  %v1178 = vld [vmem:[#allocation2 + $0x10] sm:$0xff]
  %v1179 = vld [vmem:[#allocation2 + $0x18] sm:$0xff]
  %v1180 = vld [vmem:[#allocation2 + $0x20] sm:$0x33]
  %v1186 = vunpack.c.l.b16 %v1176
  %v1187 = vunpack.c.h.b16 %v1176
  %v1188 = vunpack.c.l.b16 %v1177
  %v1189 = vunpack.c.h.b16 %v1177
  %v1190 = vunpack.c.l.b16 %v1178
  %v1191 = vunpack.c.h.b16 %v1178
  %v1192 = vunpack.c.l.b16 %v1179
  %v1193 = vunpack.c.h.b16 %v1179
  %v1194 = vunpack.c.l.b16 %v1180
  %v1195 = vunpack.c.h.b16 %v1180
  %v1196 = vpack.c.b16 %v1188, %v1186
  %v1197 = vpack.c.b16 %v1189, %v1187
  %v1198 = vpack.c.b16 %v1192, %v1190
  %v1199 = vpack.c.b16 %v1193, %v1191
  %v1200 = vpack.c.b16 %v1194, %v1194
  %v1201 = vpack.c.b16 %v1195, %v1195
  %v1207 = vsel %vm349, %v985, 0
  %v1210 = vsel %vm353, %v1200, 0
  %v1213 = vsel %vm353, %v1201, 0
  %1215 = vmatprep.subr.bf16.mxu0 0
  %1216 = vmatpush1.bf16.msra.mxu0 0
  %1217 = vmatprep.subr.bf16.mxu0 0
  %1218 = vmatpush1.bf16.msra.mxu0 0
  %1219 = vmatprep.subr.bf16.mxu0 0
  %1220 = vmatpush1.bf16.msra.mxu0 0
  %1221 = vmatprep.subr.bf16.mxu0 0
  %1222 = vmatpush1.bf16.msra.mxu0 0
  %1223 = vmatprep.subr.bf16.mxu0 0
  %1224 = vmatpush1.bf16.msra.mxu0 0
  %1225 = vmatprep.subr.bf16.mxu0 %v1213
  %1226 = vmatpush1.bf16.msra.mxu0 %v1210
  %1227 = vmatprep.subr.bf16.mxu0 %v1199
  %1228 = vmatpush1.bf16.msra.mxu0 %v1198
  %1229 = vmatprep.subr.bf16.mxu0 %v1197
  %1230 = vmatpush1.bf16.msra.mxu0 %v1196
  %1231 = vmatprep.subr.bf16.mxu0 0
  %1232 = vmatpush2.bf16.msra.mxu0 0
  %1233 = vmatprep.subr.bf16.mxu0 0
  %1234 = vmatpush2.bf16.msra.mxu0 0
  %1235 = vmatprep.subr.bf16.mxu0 0
  %1236 = vmatpush2.bf16.msra.mxu0 0
  %1237 = vmatprep.subr.bf16.mxu0 0
  %1238 = vmatpush2.bf16.msra.mxu0 0
  %1239 = vmatprep.subr.bf16.mxu0 0
  %1240 = vmatpush2.bf16.msra.mxu0 0
  %1241 = vmatprep.subr.bf16.mxu0 0
  %1242 = vmatpush2.bf16.msra.mxu0 0
  %1243 = vmatprep.subr.bf16.mxu0 0
  %1244 = vmatpush2.bf16.msra.mxu0 0
  %1245 = vmatprep.subr.bf16.mxu0 0
  %1246 = vmatpush2.bf16.msra.mxu0 0
  %1247 = vmatprep.mubr.bf16.mxu0 0
  %1248 = vmatmul.mubr.bf16.gmra.mxu0 %v1207
  %v1249 = vpop.f32.mrf.mxu0
  %v1250 = vadd.f32 0.0, %v1249
  %v1251 = vpop.f32.mrf.mxu0
  %v1252 = vadd.f32 0.0, %v1251
  %v1253 = vpop.f32.mrf.mxu0
  %v1254 = vpop.f32.mrf.mxu0
  %1255 = vdwg.mxu0
  %1258 = vrot.lane.b32.xlu0 %v983, 17
  %v1259 = vpop.permute.xlu0 %1258
  %1260 = vrot.lane.b32.xlu0 %v984, 17
  %v1261 = vpop.permute.xlu0 %1260
  %v1262 = vsel %vm76, %v1259, %v1261
  %v1266 = vsel %vm76, 0.0, %v1259
  %v1267 = vsel %vm76, %v1261, 0.0
  %v1268 = vmul.f32 %v1266, %v58
  %v1269 = vmul.f32 %v1262, %v59
  %v1270 = vpack.c.bf16 %v1268, %v1268
  %v1271 = vpack.c.bf16 %v1269, %v1269
  %v1274 = vunpack.c.l.b16 %v1270
  %v1275 = vunpack.c.l.b16 %v1271
  %v1276 = vpack.c.b16 %v1275, %v1274
  %1278 = vst [vmem:[#allocation2] sm:$0x33] %v1276
  %v1279 = vpack.c.bf16 %v1266, %v1266
  %v1280 = vpack.c.bf16 %v1262, %v1262
  %v1281 = vpack.c.bf16 %v1267, %v1267
  %v1285 = vunpack.c.l.b16 %v1279
  %v1286 = vunpack.c.l.b16 %v1280
  %v1287 = vunpack.c.l.b16 %v1281
  %v1288 = vpack.c.b16 %v1286, %v1285
  %v1289 = vpack.c.b16 %v1287, %v1287
  %v1290 = vrot.slane %v1288, 6
  %v1291 = vrot.slane %v1289, 6
  %1292 = vrot.lane.b32.xlu0 %v1290, 127
  %v1293 = vpop.permute.xlu0 %1292
  %1294 = vrot.lane.b32.xlu0 %v1291, 127
  %v1295 = vpop.permute.xlu0 %1294
  %v1296 = vrot.slane %v1293, 4
  %v1297 = vrot.slane %v1295, 4
  %v1298 = vsel %vm113, %v1296, %v1297
  %v1299 = vsel %vm115, %v1293, %v1298
  %1301 = vst [vmem:[#allocation2] sm:$0xcc] %v1299
  %v1302 = vmul.f32 %v1266, %v122
  %v1303 = vmul.f32 %v1262, %v126
  %v1304 = vmul.f32 %v1267, %v124
  %v1305 = vpack.c.bf16 %v1302, %v1302
  %v1306 = vpack.c.bf16 %v1303, %v1303
  %v1307 = vpack.c.bf16 %v1304, %v1304
  %v1311 = vunpack.c.l.b16 %v1305
  %v1312 = vunpack.c.l.b16 %v1306
  %v1313 = vunpack.c.l.b16 %v1307
  %v1314 = vpack.c.b16 %v1312, %v1311
  %v1315 = vpack.c.b16 %v1313, %v1313
  %1316 = vrot.lane.b32.xlu0 %v1314, 126
  %v1317 = vpop.permute.xlu0 %1316
  %1318 = vrot.lane.b32.xlu0 %v1315, 126
  %v1319 = vpop.permute.xlu0 %1318
  %v1320 = vrot.slane %v1317, 4
  %v1321 = vrot.slane %v1319, 4
  %v1322 = vsel %vm113, %v1320, %v1321
  %v1323 = vsel %vm151, %v1317, %v1322
  %1325 = vst [vmem:[#allocation2 + $0x8] sm:$0x33] %v1323
  %v1326 = vmul.f32 %v1266, %v158
  %v1327 = vmul.f32 %v1262, %v162
  %v1328 = vmul.f32 %v1267, %v160
  %v1329 = vpack.c.bf16 %v1326, %v1326
  %v1330 = vpack.c.bf16 %v1327, %v1327
  %v1331 = vpack.c.bf16 %v1328, %v1328
  %v1335 = vunpack.c.l.b16 %v1329
  %v1336 = vunpack.c.l.b16 %v1330
  %v1337 = vunpack.c.l.b16 %v1331
  %v1338 = vpack.c.b16 %v1336, %v1335
  %v1339 = vpack.c.b16 %v1337, %v1337
  %v1340 = vrot.slane %v1338, 6
  %v1341 = vrot.slane %v1339, 6
  %1342 = vrot.lane.b32.xlu0 %v1340, 112
  %v1343 = vpop.permute.xlu0 %1342
  %1344 = vrot.lane.b32.xlu0 %v1341, 112
  %v1345 = vpop.permute.xlu0 %1344
  %v1346 = vrot.slane %v1343, 4
  %v1347 = vrot.slane %v1345, 4
  %v1348 = vsel %vm113, %v1346, %v1347
  %v1349 = vsel %vm189, %v1343, %v1348
  %1351 = vst [vmem:[#allocation2 + $0x8] sm:$0xcc] %v1349
  %1352 = vrot.lane.b32.xlu0 %v1288, 111
  %v1353 = vpop.permute.xlu0 %1352
  %1354 = vrot.lane.b32.xlu0 %v1289, 111
  %v1355 = vpop.permute.xlu0 %1354
  %v1356 = vrot.slane %v1353, 4
  %v1357 = vrot.slane %v1355, 4
  %v1358 = vsel %vm113, %v1356, %v1357
  %v1359 = vsel %vm200, %v1353, %v1358
  %1361 = vst [vmem:[#allocation2 + $0x10] sm:$0x33] %v1359
  %v1362 = vmul.f32 %v1266, %v205
  %v1363 = vmul.f32 %v1262, %v209
  %v1364 = vmul.f32 %v1267, %v207
  %v1365 = vpack.c.bf16 %v1362, %v1362
  %v1366 = vpack.c.bf16 %v1363, %v1363
  %v1367 = vpack.c.bf16 %v1364, %v1364
  %v1371 = vunpack.c.l.b16 %v1365
  %v1372 = vunpack.c.l.b16 %v1366
  %v1373 = vunpack.c.l.b16 %v1367
  %v1374 = vpack.c.b16 %v1372, %v1371
  %v1375 = vpack.c.b16 %v1373, %v1373
  %v1376 = vrot.slane %v1374, 6
  %v1377 = vrot.slane %v1375, 6
  %1378 = vrot.lane.b32.xlu0 %v1376, 110
  %v1379 = vpop.permute.xlu0 %1378
  %1380 = vrot.lane.b32.xlu0 %v1377, 110
  %v1381 = vpop.permute.xlu0 %1380
  %v1382 = vrot.slane %v1379, 4
  %v1383 = vrot.slane %v1381, 4
  %v1384 = vsel %vm113, %v1382, %v1383
  %v1385 = vsel %vm236, %v1379, %v1384
  %1387 = vst [vmem:[#allocation2 + $0x10] sm:$0xcc] %v1385
  %v1388 = vmul.f32 %v1266, %v241
  %v1389 = vmul.f32 %v1262, %v245
  %v1390 = vmul.f32 %v1267, %v243
  %v1391 = vpack.c.bf16 %v1388, %v1388
  %v1392 = vpack.c.bf16 %v1389, %v1389
  %v1393 = vpack.c.bf16 %v1390, %v1390
  %v1397 = vunpack.c.l.b16 %v1391
  %v1398 = vunpack.c.l.b16 %v1392
  %v1399 = vunpack.c.l.b16 %v1393
  %v1400 = vpack.c.b16 %v1398, %v1397
  %v1401 = vpack.c.b16 %v1399, %v1399
  %1402 = vrot.lane.b32.xlu0 %v1400, 96
  %v1403 = vpop.permute.xlu0 %1402
  %1404 = vrot.lane.b32.xlu0 %v1401, 96
  %v1405 = vpop.permute.xlu0 %1404
  %v1406 = vrot.slane %v1403, 4
  %v1407 = vrot.slane %v1405, 4
  %v1408 = vsel %vm113, %v1406, %v1407
  %v1409 = vsel %vm270, %v1403, %v1408
  %1411 = vst [vmem:[#allocation2 + $0x18] sm:$0x33] %v1409
  %1412 = vrot.lane.b32.xlu0 %v1290, 95
  %v1413 = vpop.permute.xlu0 %1412
  %1414 = vrot.lane.b32.xlu0 %v1291, 95
  %v1415 = vpop.permute.xlu0 %1414
  %v1416 = vrot.slane %v1413, 4
  %v1417 = vrot.slane %v1415, 4
  %v1418 = vsel %vm113, %v1416, %v1417
  %v1419 = vsel %vm281, %v1413, %v1418
  %1421 = vst [vmem:[#allocation2 + $0x18] sm:$0xcc] %v1419
  %v1422 = vmul.f32 %v1266, %v286
  %v1423 = vmul.f32 %v1262, %v290
  %v1424 = vmul.f32 %v1267, %v288
  %v1425 = vpack.c.bf16 %v1422, %v1422
  %v1426 = vpack.c.bf16 %v1423, %v1423
  %v1427 = vpack.c.bf16 %v1424, %v1424
  %v1431 = vunpack.c.l.b16 %v1425
  %v1432 = vunpack.c.l.b16 %v1426
  %v1433 = vunpack.c.l.b16 %v1427
  %v1434 = vpack.c.b16 %v1432, %v1431
  %v1435 = vpack.c.b16 %v1433, %v1433
  %1436 = vrot.lane.b32.xlu0 %v1434, 94
  %v1437 = vpop.permute.xlu0 %1436
  %1438 = vrot.lane.b32.xlu0 %v1435, 94
  %v1439 = vpop.permute.xlu0 %1438
  %v1440 = vrot.slane %v1437, 4
  %v1441 = vrot.slane %v1439, 4
  %v1442 = vsel %vm113, %v1440, %v1441
  %v1443 = vsel %vm315, %v1437, %v1442
  %1445 = vst [vmem:[#allocation2 + $0x20] sm:$0x33] %v1443
  %v1446 = vld [vmem:[#allocation2] sm:$0xff]
  %v1447 = vld [vmem:[#allocation2 + $0x8] sm:$0xff]
  %v1448 = vld [vmem:[#allocation2 + $0x10] sm:$0xff]
  %v1449 = vld [vmem:[#allocation2 + $0x18] sm:$0xff]
  %v1450 = vld [vmem:[#allocation2 + $0x20] sm:$0x33]
  %v1456 = vunpack.c.l.b16 %v1446
  %v1457 = vunpack.c.h.b16 %v1446
  %v1458 = vunpack.c.l.b16 %v1447
  %v1459 = vunpack.c.h.b16 %v1447
  %v1460 = vunpack.c.l.b16 %v1448
  %v1461 = vunpack.c.h.b16 %v1448
  %v1462 = vunpack.c.l.b16 %v1449
  %v1463 = vunpack.c.h.b16 %v1449
  %v1464 = vunpack.c.l.b16 %v1450
  %v1465 = vunpack.c.h.b16 %v1450
  %v1466 = vpack.c.b16 %v1458, %v1456
  %v1467 = vpack.c.b16 %v1459, %v1457
  %v1468 = vpack.c.b16 %v1462, %v1460
  %v1469 = vpack.c.b16 %v1463, %v1461
  %v1470 = vpack.c.b16 %v1464, %v1464
  %v1471 = vpack.c.b16 %v1465, %v1465
  %v1477 = vsel %vm353, %v1470, 0
  %v1480 = vsel %vm353, %v1471, 0
  %1482 = vmatprep.subr.bf16.mxu0 0
  %1483 = vmatpush1.bf16.msra.mxu0 0
  %1484 = vmatprep.subr.bf16.mxu0 0
  %1485 = vmatpush1.bf16.msra.mxu0 0
  %1486 = vmatprep.subr.bf16.mxu0 0
  %1487 = vmatpush1.bf16.msra.mxu0 0
  %1488 = vmatprep.subr.bf16.mxu0 0
  %1489 = vmatpush1.bf16.msra.mxu0 0
  %1490 = vmatprep.subr.bf16.mxu0 0
  %1491 = vmatpush1.bf16.msra.mxu0 0
  %1492 = vmatprep.subr.bf16.mxu0 %v1480
  %1493 = vmatpush1.bf16.msra.mxu0 %v1477
  %1494 = vmatprep.subr.bf16.mxu0 %v1469
  %1495 = vmatpush1.bf16.msra.mxu0 %v1468
  %1496 = vmatprep.subr.bf16.mxu0 %v1467
  %1497 = vmatpush1.bf16.msra.mxu0 %v1466
  %1498 = vmatprep.subr.bf16.mxu0 0
  %1499 = vmatpush2.bf16.msra.mxu0 0
  %1500 = vmatprep.subr.bf16.mxu0 0
  %1501 = vmatpush2.bf16.msra.mxu0 0
  %1502 = vmatprep.subr.bf16.mxu0 0
  %1503 = vmatpush2.bf16.msra.mxu0 0
  %1504 = vmatprep.subr.bf16.mxu0 0
  %1505 = vmatpush2.bf16.msra.mxu0 0
  %1506 = vmatprep.subr.bf16.mxu0 0
  %1507 = vmatpush2.bf16.msra.mxu0 0
  %1508 = vmatprep.subr.bf16.mxu0 0
  %1509 = vmatpush2.bf16.msra.mxu0 0
  %1510 = vmatprep.subr.bf16.mxu0 0
  %1511 = vmatpush2.bf16.msra.mxu0 0
  %1512 = vmatprep.subr.bf16.mxu0 0
  %1513 = vmatpush2.bf16.msra.mxu0 0
  %1514 = vmatprep.mubr.bf16.mxu0 0
  %1515 = vmatmul.mubr.bf16.gmra.mxu0 %v1207
  %v1516 = vpop.f32.mrf.mxu0
  %v1517 = vadd.f32 0.0, %v1516
  %v1518 = vpop.f32.mrf.mxu0
  %v1519 = vadd.f32 0.0, %v1518
  %v1520 = vpop.f32.mrf.mxu0
  %v1521 = vpop.f32.mrf.mxu0
  %1522 = vdwg.mxu0
  %v1523 = vmul.f32 %v1250, %v1250
  %v1524 = vmul.f32 %v1252, %v1252
  %1525 = vmatprep.subr.mxu0 0.0
  %1526 = vmatpush1.msra.mxu0 1.0
  %1527 = vmatprep.subr.mxu0 0.0
  %1528 = vmatpush1.msra.mxu0 1.0
  %1529 = vmatprep.subr.mxu0 0.0
  %1530 = vmatpush1.msra.mxu0 1.0
  %1531 = vmatprep.subr.mxu0 0.0
  %1532 = vmatpush1.msra.mxu0 1.0
  %1533 = vmatprep.subr.mxu0 0.0
  %1534 = vmatpush1.msra.mxu0 1.0
  %1535 = vmatprep.subr.mxu0 0.0
  %1536 = vmatpush1.msra.mxu0 1.0
  %1537 = vmatprep.subr.mxu0 0.0
  %1538 = vmatpush1.msra.mxu0 1.0
  %1539 = vmatprep.subr.mxu0 0.0
  %1540 = vmatpush1.msra.mxu0 1.0
  %1541 = vmatprep.subr.mxu0 0.0
  %1542 = vmatpush1.msra.mxu0 1.0
  %1543 = vmatprep.subr.mxu0 0.0
  %1544 = vmatpush1.msra.mxu0 1.0
  %1545 = vmatprep.subr.mxu0 0.0
  %1546 = vmatpush1.msra.mxu0 1.0
  %1547 = vmatprep.subr.mxu0 0.0
  %1548 = vmatpush1.msra.mxu0 1.0
  %1549 = vmatprep.subr.mxu0 0.0
  %1550 = vmatpush1.msra.mxu0 1.0
  %1551 = vmatprep.subr.mxu0 0.0
  %1552 = vmatpush1.msra.mxu0 1.0
  %1553 = vmatprep.subr.mxu0 0.0
  %1554 = vmatpush1.msra.mxu0 1.0
  %1555 = vmatprep.subr.mxu0 0.0
  %1556 = vmatpush1.msra.mxu0 1.0
  %1557 = vmatprep.subr.mxu0 0.0
  %1558 = vmatpush2.msra.mxu0 1.0
  %1559 = vmatprep.subr.mxu0 0.0
  %1560 = vmatpush2.msra.mxu0 1.0
  %1561 = vmatprep.subr.mxu0 0.0
  %1562 = vmatpush2.msra.mxu0 1.0
  %1563 = vmatprep.subr.mxu0 0.0
  %1564 = vmatpush2.msra.mxu0 1.0
  %1565 = vmatprep.subr.mxu0 0.0
  %1566 = vmatpush2.msra.mxu0 1.0
  %1567 = vmatprep.subr.mxu0 0.0
  %1568 = vmatpush2.msra.mxu0 1.0
  %1569 = vmatprep.subr.mxu0 0.0
  %1570 = vmatpush2.msra.mxu0 1.0
  %1571 = vmatprep.subr.mxu0 0.0
  %1572 = vmatpush2.msra.mxu0 1.0
  %1573 = vmatprep.subr.mxu0 0.0
  %1574 = vmatpush2.msra.mxu0 1.0
  %1575 = vmatprep.subr.mxu0 0.0
  %1576 = vmatpush2.msra.mxu0 1.0
  %1577 = vmatprep.subr.mxu0 0.0
  %1578 = vmatpush2.msra.mxu0 1.0
  %1579 = vmatprep.subr.mxu0 0.0
  %1580 = vmatpush2.msra.mxu0 1.0
  %1581 = vmatprep.subr.mxu0 0.0
  %1582 = vmatpush2.msra.mxu0 1.0
  %1583 = vmatprep.subr.mxu0 0.0
  %1584 = vmatpush2.msra.mxu0 1.0
  %1585 = vmatprep.subr.mxu0 0.0
  %1586 = vmatpush2.msra.mxu0 1.0
  %1587 = vmatprep.subr.mxu0 0.0
  %1588 = vmatpush2.msra.mxu0 1.0
  %1589 = vmatprep.mubr.f32.mxu0 %v1519
  %1590 = vmatmul.mubr.f32.gmra.mxu0 %v1517
  %v1591 = vpop.f32.mrf.mxu0
  %v1592 = vadd.f32 0.0, %v1591
  %v1593 = vpop.f32.mrf.mxu0
  %1594 = vdwg.mxu0
  %1595 = vmatprep.subr.mxu0 0.0
  %1596 = vmatpush1.msra.mxu0 1.0
  %1597 = vmatprep.subr.mxu0 0.0
  %1598 = vmatpush1.msra.mxu0 1.0
  %1599 = vmatprep.subr.mxu0 0.0
  %1600 = vmatpush1.msra.mxu0 1.0
  %1601 = vmatprep.subr.mxu0 0.0
  %1602 = vmatpush1.msra.mxu0 1.0
  %1603 = vmatprep.subr.mxu0 0.0
  %1604 = vmatpush1.msra.mxu0 1.0
  %1605 = vmatprep.subr.mxu0 0.0
  %1606 = vmatpush1.msra.mxu0 1.0
  %1607 = vmatprep.subr.mxu0 0.0
  %1608 = vmatpush1.msra.mxu0 1.0
  %1609 = vmatprep.subr.mxu0 0.0
  %1610 = vmatpush1.msra.mxu0 1.0
  %1611 = vmatprep.subr.mxu0 0.0
  %1612 = vmatpush1.msra.mxu0 1.0
  %1613 = vmatprep.subr.mxu0 0.0
  %1614 = vmatpush1.msra.mxu0 1.0
  %1615 = vmatprep.subr.mxu0 0.0
  %1616 = vmatpush1.msra.mxu0 1.0
  %1617 = vmatprep.subr.mxu0 0.0
  %1618 = vmatpush1.msra.mxu0 1.0
  %1619 = vmatprep.subr.mxu0 0.0
  %1620 = vmatpush1.msra.mxu0 1.0
  %1621 = vmatprep.subr.mxu0 0.0
  %1622 = vmatpush1.msra.mxu0 1.0
  %1623 = vmatprep.subr.mxu0 0.0
  %1624 = vmatpush1.msra.mxu0 1.0
  %1625 = vmatprep.subr.mxu0 0.0
  %1626 = vmatpush1.msra.mxu0 1.0
  %1627 = vmatprep.subr.mxu0 0.0
  %1628 = vmatpush2.msra.mxu0 1.0
  %1629 = vmatprep.subr.mxu0 0.0
  %1630 = vmatpush2.msra.mxu0 1.0
  %1631 = vmatprep.subr.mxu0 0.0
  %1632 = vmatpush2.msra.mxu0 1.0
  %1633 = vmatprep.subr.mxu0 0.0
  %1634 = vmatpush2.msra.mxu0 1.0
  %1635 = vmatprep.subr.mxu0 0.0
  %1636 = vmatpush2.msra.mxu0 1.0
  %1637 = vmatprep.subr.mxu0 0.0
  %1638 = vmatpush2.msra.mxu0 1.0
  %1639 = vmatprep.subr.mxu0 0.0
  %1640 = vmatpush2.msra.mxu0 1.0
  %1641 = vmatprep.subr.mxu0 0.0
  %1642 = vmatpush2.msra.mxu0 1.0
  %1643 = vmatprep.subr.mxu0 0.0
  %1644 = vmatpush2.msra.mxu0 1.0
  %1645 = vmatprep.subr.mxu0 0.0
  %1646 = vmatpush2.msra.mxu0 1.0
  %1647 = vmatprep.subr.mxu0 0.0
  %1648 = vmatpush2.msra.mxu0 1.0
  %1649 = vmatprep.subr.mxu0 0.0
  %1650 = vmatpush2.msra.mxu0 1.0
  %1651 = vmatprep.subr.mxu0 0.0
  %1652 = vmatpush2.msra.mxu0 1.0
  %1653 = vmatprep.subr.mxu0 0.0
  %1654 = vmatpush2.msra.mxu0 1.0
  %1655 = vmatprep.subr.mxu0 0.0
  %1656 = vmatpush2.msra.mxu0 1.0
  %1657 = vmatprep.subr.mxu0 0.0
  %1658 = vmatpush2.msra.mxu0 1.0
  %1659 = vmatprep.mubr.f32.mxu0 %v1252
  %1660 = vmatmul.mubr.f32.gmra.mxu0 %v1250
  %v1661 = vpop.f32.mrf.mxu0
  %v1662 = vadd.f32 %v1592, %v1661
  %v1663 = vpop.f32.mrf.mxu0
  %1664 = vdwg.mxu0
  %v1665 = vmul.f32 %v1517, %v1517
  %v1666 = vmul.f32 %v1519, %v1519
  %1667 = vmatprep.subr.mxu0 0.0
  %1668 = vmatpush1.msra.mxu0 1.0
  %1669 = vmatprep.subr.mxu0 0.0
  %1670 = vmatpush1.msra.mxu0 1.0
  %1671 = vmatprep.subr.mxu0 0.0
  %1672 = vmatpush1.msra.mxu0 1.0
  %1673 = vmatprep.subr.mxu0 0.0
  %1674 = vmatpush1.msra.mxu0 1.0
  %1675 = vmatprep.subr.mxu0 0.0
  %1676 = vmatpush1.msra.mxu0 1.0
  %1677 = vmatprep.subr.mxu0 0.0
  %1678 = vmatpush1.msra.mxu0 1.0
  %1679 = vmatprep.subr.mxu0 0.0
  %1680 = vmatpush1.msra.mxu0 1.0
  %1681 = vmatprep.subr.mxu0 0.0
  %1682 = vmatpush1.msra.mxu0 1.0
  %1683 = vmatprep.subr.mxu0 0.0
  %1684 = vmatpush1.msra.mxu0 1.0
  %1685 = vmatprep.subr.mxu0 0.0
  %1686 = vmatpush1.msra.mxu0 1.0
  %1687 = vmatprep.subr.mxu0 0.0
  %1688 = vmatpush1.msra.mxu0 1.0
  %1689 = vmatprep.subr.mxu0 0.0
  %1690 = vmatpush1.msra.mxu0 1.0
  %1691 = vmatprep.subr.mxu0 0.0
  %1692 = vmatpush1.msra.mxu0 1.0
  %1693 = vmatprep.subr.mxu0 0.0
  %1694 = vmatpush1.msra.mxu0 1.0
  %1695 = vmatprep.subr.mxu0 0.0
  %1696 = vmatpush1.msra.mxu0 1.0
  %1697 = vmatprep.subr.mxu0 0.0
  %1698 = vmatpush1.msra.mxu0 1.0
  %1699 = vmatprep.subr.mxu0 0.0
  %1700 = vmatpush2.msra.mxu0 1.0
  %1701 = vmatprep.subr.mxu0 0.0
  %1702 = vmatpush2.msra.mxu0 1.0
  %1703 = vmatprep.subr.mxu0 0.0
  %1704 = vmatpush2.msra.mxu0 1.0
  %1705 = vmatprep.subr.mxu0 0.0
  %1706 = vmatpush2.msra.mxu0 1.0
  %1707 = vmatprep.subr.mxu0 0.0
  %1708 = vmatpush2.msra.mxu0 1.0
  %1709 = vmatprep.subr.mxu0 0.0
  %1710 = vmatpush2.msra.mxu0 1.0
  %1711 = vmatprep.subr.mxu0 0.0
  %1712 = vmatpush2.msra.mxu0 1.0
  %1713 = vmatprep.subr.mxu0 0.0
  %1714 = vmatpush2.msra.mxu0 1.0
  %1715 = vmatprep.subr.mxu0 0.0
  %1716 = vmatpush2.msra.mxu0 1.0
  %1717 = vmatprep.subr.mxu0 0.0
  %1718 = vmatpush2.msra.mxu0 1.0
  %1719 = vmatprep.subr.mxu0 0.0
  %1720 = vmatpush2.msra.mxu0 1.0
  %1721 = vmatprep.subr.mxu0 0.0
  %1722 = vmatpush2.msra.mxu0 1.0
  %1723 = vmatprep.subr.mxu0 0.0
  %1724 = vmatpush2.msra.mxu0 1.0
  %1725 = vmatprep.subr.mxu0 0.0
  %1726 = vmatpush2.msra.mxu0 1.0
  %1727 = vmatprep.subr.mxu0 0.0
  %1728 = vmatpush2.msra.mxu0 1.0
  %1729 = vmatprep.subr.mxu0 0.0
  %1730 = vmatpush2.msra.mxu0 1.0
  %1731 = vmatprep.mubr.f32.mxu0 %v1666
  %1732 = vmatmul.mubr.f32.gmra.mxu0 %v1665
  %v1733 = vpop.f32.mrf.mxu0
  %v1734 = vadd.f32 0.0, %v1733
  %v1735 = vpop.f32.mrf.mxu0
  %1736 = vdwg.mxu0
  %1737 = vmatprep.subr.mxu0 0.0
  %1738 = vmatpush1.msra.mxu0 1.0
  %1739 = vmatprep.subr.mxu0 0.0
  %1740 = vmatpush1.msra.mxu0 1.0
  %1741 = vmatprep.subr.mxu0 0.0
  %1742 = vmatpush1.msra.mxu0 1.0
  %1743 = vmatprep.subr.mxu0 0.0
  %1744 = vmatpush1.msra.mxu0 1.0
  %1745 = vmatprep.subr.mxu0 0.0
  %1746 = vmatpush1.msra.mxu0 1.0
  %1747 = vmatprep.subr.mxu0 0.0
  %1748 = vmatpush1.msra.mxu0 1.0
  %1749 = vmatprep.subr.mxu0 0.0
  %1750 = vmatpush1.msra.mxu0 1.0
  %1751 = vmatprep.subr.mxu0 0.0
  %1752 = vmatpush1.msra.mxu0 1.0
  %1753 = vmatprep.subr.mxu0 0.0
  %1754 = vmatpush1.msra.mxu0 1.0
  %1755 = vmatprep.subr.mxu0 0.0
  %1756 = vmatpush1.msra.mxu0 1.0
  %1757 = vmatprep.subr.mxu0 0.0
  %1758 = vmatpush1.msra.mxu0 1.0
  %1759 = vmatprep.subr.mxu0 0.0
  %1760 = vmatpush1.msra.mxu0 1.0
  %1761 = vmatprep.subr.mxu0 0.0
  %1762 = vmatpush1.msra.mxu0 1.0
  %1763 = vmatprep.subr.mxu0 0.0
  %1764 = vmatpush1.msra.mxu0 1.0
  %1765 = vmatprep.subr.mxu0 0.0
  %1766 = vmatpush1.msra.mxu0 1.0
  %1767 = vmatprep.subr.mxu0 0.0
  %1768 = vmatpush1.msra.mxu0 1.0
  %1769 = vmatprep.subr.mxu0 0.0
  %1770 = vmatpush2.msra.mxu0 1.0
  %1771 = vmatprep.subr.mxu0 0.0
  %1772 = vmatpush2.msra.mxu0 1.0
  %1773 = vmatprep.subr.mxu0 0.0
  %1774 = vmatpush2.msra.mxu0 1.0
  %1775 = vmatprep.subr.mxu0 0.0
  %1776 = vmatpush2.msra.mxu0 1.0
  %1777 = vmatprep.subr.mxu0 0.0
  %1778 = vmatpush2.msra.mxu0 1.0
  %1779 = vmatprep.subr.mxu0 0.0
  %1780 = vmatpush2.msra.mxu0 1.0
  %1781 = vmatprep.subr.mxu0 0.0
  %1782 = vmatpush2.msra.mxu0 1.0
  %1783 = vmatprep.subr.mxu0 0.0
  %1784 = vmatpush2.msra.mxu0 1.0
  %1785 = vmatprep.subr.mxu0 0.0
  %1786 = vmatpush2.msra.mxu0 1.0
  %1787 = vmatprep.subr.mxu0 0.0
  %1788 = vmatpush2.msra.mxu0 1.0
  %1789 = vmatprep.subr.mxu0 0.0
  %1790 = vmatpush2.msra.mxu0 1.0
  %1791 = vmatprep.subr.mxu0 0.0
  %1792 = vmatpush2.msra.mxu0 1.0
  %1793 = vmatprep.subr.mxu0 0.0
  %1794 = vmatpush2.msra.mxu0 1.0
  %1795 = vmatprep.subr.mxu0 0.0
  %1796 = vmatpush2.msra.mxu0 1.0
  %1797 = vmatprep.subr.mxu0 0.0
  %1798 = vmatpush2.msra.mxu0 1.0
  %1799 = vmatprep.subr.mxu0 0.0
  %1800 = vmatpush2.msra.mxu0 1.0
  %1801 = vmatprep.mubr.f32.mxu0 %v1524
  %1802 = vmatmul.mubr.f32.gmra.mxu0 %v1523
  %v1803 = vpop.f32.mrf.mxu0
  %v1804 = vadd.f32 %v1734, %v1803
  %v1805 = vpop.f32.mrf.mxu0
  %1806 = vdwg.mxu0
  %v1807 = vmul.f32 %v1662, 0.001953125
  %v1808 = vmul.f32 %v1804, 0.001953125
  %v1809 = vmul.f32 %v1807, %v1807
  %v1810 = vsub.f32 %v1808, %v1809
  %v1811 = vld [vmem:[%s5] sm:$0xf]
  %v1812 = vadd.f32 %v1810, 1e-05
  %v1813 = vrsqrt.pop %v1812
  %v1814 = vmul.f32 %v1811, %v1813
  %v1815 = vld [vmem:[%s6] sm:$0xf]
  %v1816 = vmul.f32 %v1807, %v1814
  %v1817 = vsub.f32 %v1815, %v1816
  %1819 = vset.pattern.permute.xlu0 0
  %1820 = vperm.xlu0 %1819, %v1814
  %v1821 = vpop.permute.xlu0 %1820
  %v1823 = vmul.f32 %v1250, %v1821
  %v1824 = vmul.f32 %v1252, %v1821
  %1826 = vset.pattern.permute.xlu0 0
  %1827 = vperm.xlu0 %1826, %v1817
  %v1828 = vpop.permute.xlu0 %1827
  %v1830 = vadd.f32 %v1823, %v1828
  %v1831 = vadd.f32 %v1824, %v1828
  %v1832 = vmul.f32 %v1517, %v1821
  %v1833 = vmul.f32 %v1519, %v1821
  %v1834 = vadd.f32 %v1832, %v1828
  %v1835 = vadd.f32 %v1833, %v1828
  %v1837 = vadd.f32 %v1830, %v66
  %v1838 = vadd.f32 %v1831, %v71
  %v1839 = vmax.f32 %v1837, 0.0
  %v1840 = vmax.f32 %v1838, 0.0
  %v1843 = vcombine.low %v1839, %v1840
  %1845 = vst [vmem:[%s7] sm:$0xff] %v1843
  %v1847 = vadd.f32 %v1834, %v68
  %v1848 = vadd.f32 %v1835, %v402
  %v1849 = vmax.f32 %v1847, 0.0
  %v1850 = vmax.f32 %v1848, 0.0
  %v1853 = vcombine.low %v1849, %v1850
  %s1855 = scalar_lea.vmem %s7, 8
  %1856 = vst [vmem:[%s1855] sm:$0xff] %v1853
  // Predicated region
  $region30: #{basic_block_pallas.1} parent=0 // pred_check
    _
  $region31: #{basic_block_pallas.1} parent=0 // pred_check_branch
    %1858 = sbr.rel (0) target = $region33
  $region32: #{basic_block_pallas.1} parent=0 // pred_region
    _
  $region33: #{basic_block_pallas.1} parent=0 // pred_fallthru
    _
  // Predicated region
  $region34: #{basic_block_pallas.1} parent=0 // pred_check
    _
  $region35: #{basic_block_pallas.1} parent=0 // pred_check_branch
    %1860 = sbr.rel (0) target = $region37
  $region36: #{basic_block_pallas.1} parent=0 // pred_region
    _
  $region37: #{basic_block_pallas.1} parent=0 // pred_fallthru
    _

</llo_original>
